<compile_context>
chip_gen: v7x
topology: tpu7x:2x2x1
jax: 0.10.0
libtpu: 0.0.40
codegen_flags: <defaults>
</compile_context>

<pallas_src>
import functools

import jax
import jax.numpy as jnp
from jax import lax
from jax.experimental import pallas as pl
from jax.experimental.pallas import tpu as pltpu


# ---------------------------------------------------------------------------
# Synthetic ViT configuration (stands in for the opaque TRT engine's network)
# ---------------------------------------------------------------------------
IMAGE_SIZE = 16
PATCH = 4
CHANS = 3
HIDDEN = 32
HEADS = 2
DH = HIDDEN // HEADS
LAYERS = 2
MLP = 64
OUT_DIM = 32
TOKENS = (IMAGE_SIZE // PATCH) ** 2          # 16
CPP = CHANS * PATCH * PATCH                  # 48


# ---------------------------------------------------------------------------
# Fused Pallas kernel (whole forward for one image per grid step)
# ---------------------------------------------------------------------------

def _mm(a, b):
    """MXU matmul: bf16 operands, f32 accumulation."""
    return jnp.dot(a.astype(jnp.bfloat16), b.astype(jnp.bfloat16),
                   preferred_element_type=jnp.float32)


def _layernorm(x, g, b, eps=1e-6):
    mean = jnp.mean(x, axis=-1, keepdims=True)
    var = jnp.mean((x - mean) ** 2, axis=-1, keepdims=True)
    return (x - mean) * lax.rsqrt(var + eps) * g + b


def _fused_vit_kernel(x_ref, pos_ref, patch_w_ref, patch_b_ref,
                      ln1_g_ref, ln1_b_ref, qkv_w_ref, qkv_b_ref,
                      proj_w_ref, proj_b_ref, ln2_g_ref, ln2_b_ref,
                      fc1_w_ref, fc1_b_ref, fc2_w_ref, fc2_b_ref,
                      lnf_g_ref, lnf_b_ref, head_w_ref, head_b_ref,
                      o_ref):
    scale = 1.0 / float(DH) ** 0.5

    # Patch embed + position embedding.
    x = x_ref[0]                                               # (TOKENS, CPP)
    h = _mm(x, patch_w_ref[...]) + patch_b_ref[...] + pos_ref[...]

    # Statically-unrolled transformer layers; stacked weights are indexed with
    # the static Python loop index, so everything stays VMEM-resident.
    for li in range(LAYERS):
        # --- attention block: LN1 -> QKV -> per-head SDPA -> proj -> residual
        y = _layernorm(h, ln1_g_ref[li], ln1_b_ref[li])
        qkv = _mm(y, qkv_w_ref[li]) + qkv_b_ref[li]            # (TOKENS, 3H)
        proj_w = proj_w_ref[li]                                # (HIDDEN, HIDDEN)
        attn_proj = proj_b_ref[li]                             # (1, HIDDEN) bcast
        for hd in range(HEADS):
            lo = hd * DH
            q = qkv[:, lo:lo + DH]
            k = qkv[:, HIDDEN + lo:HIDDEN + lo + DH]
            v = qkv[:, 2 * HIDDEN + lo:2 * HIDDEN + lo + DH]
            # Score without materializing k.T: contract last dims directly.
            s = lax.dot_general(
                q.astype(jnp.bfloat16), k.astype(jnp.bfloat16),
                (((1,), (1,)), ((), ())),
                preferred_element_type=jnp.float32) * scale
            s = s - jnp.max(s, axis=-1, keepdims=True)
            p = jnp.exp(s)
            p = p * pl.reciprocal(jnp.sum(p, axis=-1, keepdims=True),
                                  approx=True)
            o_h = _mm(p, v)                                    # (TOKENS, DH)
            # Fold the output projection into the head loop (== concat @ W).
            attn_proj = attn_proj + _mm(o_h, proj_w[lo:lo + DH, :])
        h = h + attn_proj

        # --- MLP block: LN2 -> FC1 + GELU -> FC2 -> residual ---
        y = _layernorm(h, ln2_g_ref[li], ln2_b_ref[li])
        # TODO(synk): torch.nn.GELU defaults to exact erf-GELU; tanh approx
        # used here for guaranteed TPU lowering (tiny numerical difference).
        y = jax.nn.gelu(_mm(y, fc1_w_ref[li]) + fc1_b_ref[li])
        h = h + _mm(y, fc2_w_ref[li]) + fc2_b_ref[li]

    # Final LN + output head; only this (TOKENS, OUT_DIM) slab hits HBM.
    y = _layernorm(h, lnf_g_ref[...], lnf_b_ref[...])
    o_ref[0] = (_mm(y, head_w_ref[...]) + head_b_ref[...]).astype(o_ref.dtype)


# ---------------------------------------------------------------------------
# Parameters & forward wrapper (glue only; all math in the fused kernel)
# ---------------------------------------------------------------------------

def init_params(key):
    def nrm(k, shape, scale=0.02):
        return (scale * jax.random.normal(k, shape)).astype(jnp.float32)

    keys = jax.random.split(key, 4 + LAYERS)
    params = {
        "patch_w": nrm(keys[0], (CPP, HIDDEN)),
        "patch_b": jnp.zeros((HIDDEN,), jnp.float32),
        "pos": nrm(keys[1], (TOKENS, HIDDEN)),
        "lnf_g": jnp.ones((HIDDEN,), jnp.float32),
        "lnf_b": jnp.zeros((HIDDEN,), jnp.float32),
        "head_w": nrm(keys[2], (HIDDEN, OUT_DIM)),
        "head_b": jnp.zeros((OUT_DIM,), jnp.float32),
        "layers": [],
    }
    for li in range(LAYERS):
        ks = jax.random.split(keys[4 + li], 4)
        params["layers"].append({
            "ln1_g": jnp.ones((HIDDEN,), jnp.float32),
            "ln1_b": jnp.zeros((HIDDEN,), jnp.float32),
            "qkv_w": nrm(ks[0], (HIDDEN, 3 * HIDDEN)),
            "qkv_b": jnp.zeros((3 * HIDDEN,), jnp.float32),
            "proj_w": nrm(ks[1], (HIDDEN, HIDDEN)),
            "proj_b": jnp.zeros((HIDDEN,), jnp.float32),
            "ln2_g": jnp.ones((HIDDEN,), jnp.float32),
            "ln2_b": jnp.zeros((HIDDEN,), jnp.float32),
            "fc1_w": nrm(ks[2], (HIDDEN, MLP)),
            "fc1_b": jnp.zeros((MLP,), jnp.float32),
            "fc2_w": nrm(ks[3], (MLP, HIDDEN)),
            "fc2_b": jnp.zeros((HIDDEN,), jnp.float32),
        })
    return params


def vit_engine_forward(params, images):
    """images: NCHW float32 (B, 3, S, S) -> (B, TOKENS, OUT_DIM)."""
    B, C, S, _ = images.shape
    assert C == CHANS and S == IMAGE_SIZE
    p = PATCH
    gh = S // p

    # Patch unfold (single cheap layout op); feature order (channel, ph, pw),
    # identical to torch.nn.Conv2d(kernel=p, stride=p) patch-embed unfolding.
    x = images.reshape(B, C, gh, p, gh, p).transpose(0, 2, 4, 1, 3, 5)
    x = x.reshape(B, TOKENS, CPP)

    L = params["layers"]
    stack = lambda name: jnp.stack([l[name] for l in L])

    inputs = [
        x,                                                    # (B, T, CPP)
        params["pos"],                                        # (T, H)
        params["patch_w"],                                    # (CPP, H)
        params["patch_b"].reshape(1, HIDDEN),
        stack("ln1_g").reshape(LAYERS, 1, HIDDEN),
        stack("ln1_b").reshape(LAYERS, 1, HIDDEN),
        stack("qkv_w"),                                       # (L, H, 3H)
        stack("qkv_b").reshape(LAYERS, 1, 3 * HIDDEN),
        stack("proj_w"),                                      # (L, H, H)
        stack("proj_b").reshape(LAYERS, 1, HIDDEN),
        stack("ln2_g").reshape(LAYERS, 1, HIDDEN),
        stack("ln2_b").reshape(LAYERS, 1, HIDDEN),
        stack("fc1_w"),                                       # (L, H, MLP)
        stack("fc1_b").reshape(LAYERS, 1, MLP),
        stack("fc2_w"),                                       # (L, MLP, H)
        stack("fc2_b").reshape(LAYERS, 1, HIDDEN),
        params["lnf_g"].reshape(1, HIDDEN),
        params["lnf_b"].reshape(1, HIDDEN),
        params["head_w"],                                     # (H, OUT)
        params["head_b"].reshape(1, OUT_DIM),
    ]

    # Image tokens are tiled over the batch grid axis; every weight uses a
    # constant index map, so it is DMA'd once and stays resident in VMEM.
    in_specs = [pl.BlockSpec((1, TOKENS, CPP), lambda b: (b, 0, 0))]
    for a in inputs[1:]:
        nd = a.ndim
        in_specs.append(pl.BlockSpec(a.shape, lambda b, _nd=nd: (0,) * _nd))

    return pl.pallas_call(
        _fused_vit_kernel,
        out_shape=jax.ShapeDtypeStruct((B, TOKENS, OUT_DIM), images.dtype),
        grid=(B,),
        in_specs=in_specs,
        out_specs=pl.BlockSpec((1, TOKENS, OUT_DIM), lambda b: (b, 0, 0)),
        compiler_params=pltpu.CompilerParams(
            dimension_semantics=("parallel",)),   # megacore sharding on v7x
    )(*inputs)


# TODO(synk): export_onnx / generate_trt_engine / load_trt_engine are TensorRT
# engine-build & file I/O steps with no Pallas equivalent; the engine's compute
# is realized directly by the fused kernel above.

if __name__ == "__main__":
    key = jax.random.PRNGKey(0)
    pkey, ikey = jax.random.split(key)
    params = init_params(pkey)
    images = jax.random.normal(ikey, (2, CHANS, IMAGE_SIZE, IMAGE_SIZE),
                               dtype=jnp.float32)

    out = jax.jit(vit_engine_forward)(params, images)
    out = jax.block_until_ready(out)
    assert out.shape == (2, TOKENS, OUT_DIM)
    assert bool(jnp.all(jnp.isfinite(out)))
    print("KERNEL_OK")
</pallas_src>

<mosaic_0001>
module attributes {stable_mosaic.version = 11 : i64} {
  func.func @_fused_vit_kernel(%arg0: i32, %arg1: memref<1x16x48xf32, #tpu.memory_space<vmem>>, %arg2: memref<16x32xf32, #tpu.memory_space<vmem>>, %arg3: memref<48x32xf32, #tpu.memory_space<vmem>>, %arg4: memref<1x32xf32, #tpu.memory_space<vmem>>, %arg5: memref<2x1x32xf32, #tpu.memory_space<vmem>>, %arg6: memref<2x1x32xf32, #tpu.memory_space<vmem>>, %arg7: memref<2x32x96xf32, #tpu.memory_space<vmem>>, %arg8: memref<2x1x96xf32, #tpu.memory_space<vmem>>, %arg9: memref<2x32x32xf32, #tpu.memory_space<vmem>>, %arg10: memref<2x1x32xf32, #tpu.memory_space<vmem>>, %arg11: memref<2x1x32xf32, #tpu.memory_space<vmem>>, %arg12: memref<2x1x32xf32, #tpu.memory_space<vmem>>, %arg13: memref<2x32x64xf32, #tpu.memory_space<vmem>>, %arg14: memref<2x1x64xf32, #tpu.memory_space<vmem>>, %arg15: memref<2x64x32xf32, #tpu.memory_space<vmem>>, %arg16: memref<2x1x32xf32, #tpu.memory_space<vmem>>, %arg17: memref<1x32xf32, #tpu.memory_space<vmem>>, %arg18: memref<1x32xf32, #tpu.memory_space<vmem>>, %arg19: memref<32x32xf32, #tpu.memory_space<vmem>>, %arg20: memref<1x32xf32, #tpu.memory_space<vmem>>, %arg21: memref<1x16x32xf32, #tpu.memory_space<vmem>>) attributes {dimension_semantics = [#tpu.dimension_semantics<parallel>], iteration_bounds = array<i64: 2>, scalar_prefetch = 0 : i64, scratch_operands = 0 : i64, tpu.core_type = #tpu.core_type<tc>, window_params = [{transform_indices = @transform_0, window_bounds = array<i64: 1, 16, 48>}, {pipeline_mode = #tpu.pipeline_mode<synchronous>, transform_indices = @transform_1, window_bounds = array<i64: 16, 32>}, {pipeline_mode = #tpu.pipeline_mode<synchronous>, transform_indices = @transform_2, window_bounds = array<i64: 48, 32>}, {pipeline_mode = #tpu.pipeline_mode<synchronous>, transform_indices = @transform_3, window_bounds = array<i64: 1, 32>}, {pipeline_mode = #tpu.pipeline_mode<synchronous>, transform_indices = @transform_4, window_bounds = array<i64: 2, 1, 32>}, {pipeline_mode = #tpu.pipeline_mode<synchronous>, transform_indices = @transform_5, window_bounds = array<i64: 2, 1, 32>}, {pipeline_mode = #tpu.pipeline_mode<synchronous>, transform_indices = @transform_6, window_bounds = array<i64: 2, 32, 96>}, {pipeline_mode = #tpu.pipeline_mode<synchronous>, transform_indices = @transform_7, window_bounds = array<i64: 2, 1, 96>}, {pipeline_mode = #tpu.pipeline_mode<synchronous>, transform_indices = @transform_8, window_bounds = array<i64: 2, 32, 32>}, {pipeline_mode = #tpu.pipeline_mode<synchronous>, transform_indices = @transform_9, window_bounds = array<i64: 2, 1, 32>}, {pipeline_mode = #tpu.pipeline_mode<synchronous>, transform_indices = @transform_10, window_bounds = array<i64: 2, 1, 32>}, {pipeline_mode = #tpu.pipeline_mode<synchronous>, transform_indices = @transform_11, window_bounds = array<i64: 2, 1, 32>}, {pipeline_mode = #tpu.pipeline_mode<synchronous>, transform_indices = @transform_12, window_bounds = array<i64: 2, 32, 64>}, {pipeline_mode = #tpu.pipeline_mode<synchronous>, transform_indices = @transform_13, window_bounds = array<i64: 2, 1, 64>}, {pipeline_mode = #tpu.pipeline_mode<synchronous>, transform_indices = @transform_14, window_bounds = array<i64: 2, 64, 32>}, {pipeline_mode = #tpu.pipeline_mode<synchronous>, transform_indices = @transform_15, window_bounds = array<i64: 2, 1, 32>}, {pipeline_mode = #tpu.pipeline_mode<synchronous>, transform_indices = @transform_16, window_bounds = array<i64: 1, 32>}, {pipeline_mode = #tpu.pipeline_mode<synchronous>, transform_indices = @transform_17, window_bounds = array<i64: 1, 32>}, {pipeline_mode = #tpu.pipeline_mode<synchronous>, transform_indices = @transform_18, window_bounds = array<i64: 32, 32>}, {pipeline_mode = #tpu.pipeline_mode<synchronous>, transform_indices = @transform_19, window_bounds = array<i64: 1, 32>}, {transform_indices = @transform_20, window_bounds = array<i64: 1, 16, 32>}]} {
    %c0 = arith.constant 0 : index
    %c0_0 = arith.constant 0 : index
    %c0_1 = arith.constant 0 : index
    %0 = vector.load %arg1[%c0, %c0_0, %c0_1] : memref<1x16x48xf32, #tpu.memory_space<vmem>>, vector<1x16x48xf32>
    %1 = vector.shape_cast %0 : vector<1x16x48xf32> to vector<16x48xf32>
    %c0_2 = arith.constant 0 : index
    %c0_3 = arith.constant 0 : index
    %2 = vector.load %arg3[%c0_2, %c0_3] : memref<48x32xf32, #tpu.memory_space<vmem>>, vector<48x32xf32>
    %3 = arith.truncf %1 : vector<16x48xf32> to vector<16x48xbf16>
    %4 = arith.truncf %2 : vector<48x32xf32> to vector<48x32xbf16>
    %cst = arith.constant dense<0.000000e+00> : vector<16x32xf32>
    %5 = tpu.matmul %3, %4, %cst {dimension_numbers = #tpu.dot_dimension_numbers<[1], [0], [0], [1], [0, 0, 1, 1], [], []>} : vector<16x48xbf16>, vector<48x32xbf16>, vector<16x32xf32> -> vector<16x32xf32>
    %c0_4 = arith.constant 0 : index
    %c0_5 = arith.constant 0 : index
    %6 = vector.load %arg4[%c0_4, %c0_5] : memref<1x32xf32, #tpu.memory_space<vmem>>, vector<1x32xf32>
    %7 = vector.broadcast %6 : vector<1x32xf32> to vector<16x32xf32>
    %8 = arith.addf %5, %7 : vector<16x32xf32>
    %c0_6 = arith.constant 0 : index
    %c0_7 = arith.constant 0 : index
    %9 = vector.load %arg2[%c0_6, %c0_7] : memref<16x32xf32, #tpu.memory_space<vmem>>, vector<16x32xf32>
    %10 = arith.addf %8, %9 : vector<16x32xf32>
    %c0_8 = arith.constant 0 : index
    %c0_9 = arith.constant 0 : index
    %c0_10 = arith.constant 0 : index
    %11 = vector.load %arg5[%c0_8, %c0_9, %c0_10] : memref<2x1x32xf32, #tpu.memory_space<vmem>>, vector<1x1x32xf32>
    %12 = vector.shape_cast %11 : vector<1x1x32xf32> to vector<1x32xf32>
    %c0_11 = arith.constant 0 : index
    %c0_12 = arith.constant 0 : index
    %c0_13 = arith.constant 0 : index
    %13 = vector.load %arg6[%c0_11, %c0_12, %c0_13] : memref<2x1x32xf32, #tpu.memory_space<vmem>>, vector<1x1x32xf32>
    %14 = vector.shape_cast %13 : vector<1x1x32xf32> to vector<1x32xf32>
    %cst_14 = arith.constant dense<0.000000e+00> : vector<16xf32>
    %15 = vector.multi_reduction <add>, %10, %cst_14 [1] : vector<16x32xf32> to vector<16xf32>
    %16 = vector.shape_cast %15 : vector<16xf32> to vector<16x1xf32>
    %cst_15 = arith.constant 3.200000e+01 : f32
    %17 = vector.broadcast %cst_15 : f32 to vector<16x1xf32>
    %18 = arith.divf %16, %17 : vector<16x1xf32>
    %19 = vector.broadcast %18 : vector<16x1xf32> to vector<16x32xf32>
    %20 = arith.subf %10, %19 : vector<16x32xf32>
    %21 = arith.mulf %20, %20 : vector<16x32xf32>
    %cst_16 = arith.constant dense<0.000000e+00> : vector<16xf32>
    %22 = vector.multi_reduction <add>, %21, %cst_16 [1] : vector<16x32xf32> to vector<16xf32>
    %23 = vector.shape_cast %22 : vector<16xf32> to vector<16x1xf32>
    %cst_17 = arith.constant 3.200000e+01 : f32
    %24 = vector.broadcast %cst_17 : f32 to vector<16x1xf32>
    %25 = arith.divf %23, %24 : vector<16x1xf32>
    %26 = vector.broadcast %18 : vector<16x1xf32> to vector<16x32xf32>
    %27 = arith.subf %10, %26 : vector<16x32xf32>
    %cst_18 = arith.constant 9.99999997E-7 : f32
    %28 = vector.broadcast %cst_18 : f32 to vector<16x1xf32>
    %29 = arith.addf %25, %28 : vector<16x1xf32>
    %30 = math.rsqrt %29 : vector<16x1xf32>
    %31 = vector.broadcast %30 : vector<16x1xf32> to vector<16x32xf32>
    %32 = arith.mulf %27, %31 : vector<16x32xf32>
    %33 = vector.broadcast %12 : vector<1x32xf32> to vector<16x32xf32>
    %34 = arith.mulf %32, %33 : vector<16x32xf32>
    %35 = vector.broadcast %14 : vector<1x32xf32> to vector<16x32xf32>
    %36 = arith.addf %34, %35 : vector<16x32xf32>
    %c0_19 = arith.constant 0 : index
    %c0_20 = arith.constant 0 : index
    %c0_21 = arith.constant 0 : index
    %37 = vector.load %arg7[%c0_19, %c0_20, %c0_21] : memref<2x32x96xf32, #tpu.memory_space<vmem>>, vector<1x32x96xf32>
    %38 = vector.shape_cast %37 : vector<1x32x96xf32> to vector<32x96xf32>
    %39 = arith.truncf %36 : vector<16x32xf32> to vector<16x32xbf16>
    %40 = arith.truncf %38 : vector<32x96xf32> to vector<32x96xbf16>
    %cst_22 = arith.constant dense<0.000000e+00> : vector<16x96xf32>
    %41 = tpu.matmul %39, %40, %cst_22 {dimension_numbers = #tpu.dot_dimension_numbers<[1], [0], [0], [1], [0, 0, 1, 1], [], []>} : vector<16x32xbf16>, vector<32x96xbf16>, vector<16x96xf32> -> vector<16x96xf32>
    %c0_23 = arith.constant 0 : index
    %c0_24 = arith.constant 0 : index
    %c0_25 = arith.constant 0 : index
    %42 = vector.load %arg8[%c0_23, %c0_24, %c0_25] : memref<2x1x96xf32, #tpu.memory_space<vmem>>, vector<1x1x96xf32>
    %43 = vector.shape_cast %42 : vector<1x1x96xf32> to vector<1x96xf32>
    %44 = vector.broadcast %43 : vector<1x96xf32> to vector<16x96xf32>
    %45 = arith.addf %41, %44 : vector<16x96xf32>
    %c0_26 = arith.constant 0 : index
    %c0_27 = arith.constant 0 : index
    %c0_28 = arith.constant 0 : index
    %46 = vector.load %arg9[%c0_26, %c0_27, %c0_28] : memref<2x32x32xf32, #tpu.memory_space<vmem>>, vector<1x32x32xf32>
    %47 = vector.shape_cast %46 : vector<1x32x32xf32> to vector<32x32xf32>
    %c0_29 = arith.constant 0 : index
    %c0_30 = arith.constant 0 : index
    %c0_31 = arith.constant 0 : index
    %48 = vector.load %arg10[%c0_29, %c0_30, %c0_31] : memref<2x1x32xf32, #tpu.memory_space<vmem>>, vector<1x1x32xf32>
    %49 = vector.shape_cast %48 : vector<1x1x32xf32> to vector<1x32xf32>
    %50 = vector.extract_strided_slice %45 {offsets = [0, 0], sizes = [16, 16], strides = [1, 1]} : vector<16x96xf32> to vector<16x16xf32>
    %51 = vector.extract_strided_slice %45 {offsets = [0, 32], sizes = [16, 16], strides = [1, 1]} : vector<16x96xf32> to vector<16x16xf32>
    %52 = vector.extract_strided_slice %45 {offsets = [0, 64], sizes = [16, 16], strides = [1, 1]} : vector<16x96xf32> to vector<16x16xf32>
    %53 = arith.truncf %50 : vector<16x16xf32> to vector<16x16xbf16>
    %54 = arith.truncf %51 : vector<16x16xf32> to vector<16x16xbf16>
    %cst_32 = arith.constant dense<0.000000e+00> : vector<16x16xf32>
    %55 = tpu.matmul %53, %54, %cst_32 {dimension_numbers = #tpu.dot_dimension_numbers<[1], [1], [0], [0], [0, 0, 1, 0], [], []>} : vector<16x16xbf16>, vector<16x16xbf16>, vector<16x16xf32> -> vector<16x16xf32>
    %cst_33 = arith.constant 2.500000e-01 : f32
    %56 = vector.broadcast %cst_33 : f32 to vector<16x16xf32>
    %57 = arith.mulf %55, %56 : vector<16x16xf32>
    %cst_34 = arith.constant dense<0xFF800000> : vector<16xf32>
    %58 = vector.multi_reduction <maximumf>, %57, %cst_34 [1] : vector<16x16xf32> to vector<16xf32>
    %59 = vector.shape_cast %58 : vector<16xf32> to vector<16x1xf32>
    %60 = vector.broadcast %59 : vector<16x1xf32> to vector<16x16xf32>
    %61 = arith.subf %57, %60 : vector<16x16xf32>
    %62 = math.exp %61 : vector<16x16xf32>
    %cst_35 = arith.constant dense<0.000000e+00> : vector<16xf32>
    %63 = vector.multi_reduction <add>, %62, %cst_35 [1] : vector<16x16xf32> to vector<16xf32>
    %64 = vector.shape_cast %63 : vector<16xf32> to vector<16x1xf32>
    %65 = tpu.reciprocal %64 {approx = true} : vector<16x1xf32> -> vector<16x1xf32>
    %66 = vector.broadcast %65 : vector<16x1xf32> to vector<16x16xf32>
    %67 = arith.mulf %62, %66 : vector<16x16xf32>
    %68 = arith.truncf %67 : vector<16x16xf32> to vector<16x16xbf16>
    %69 = arith.truncf %52 : vector<16x16xf32> to vector<16x16xbf16>
    %cst_36 = arith.constant dense<0.000000e+00> : vector<16x16xf32>
    %70 = tpu.matmul %68, %69, %cst_36 {dimension_numbers = #tpu.dot_dimension_numbers<[1], [0], [0], [1], [0, 0, 1, 1], [], []>} : vector<16x16xbf16>, vector<16x16xbf16>, vector<16x16xf32> -> vector<16x16xf32>
    %71 = vector.extract_strided_slice %47 {offsets = [0, 0], sizes = [16, 32], strides = [1, 1]} : vector<32x32xf32> to vector<16x32xf32>
    %72 = arith.truncf %70 : vector<16x16xf32> to vector<16x16xbf16>
    %73 = arith.truncf %71 : vector<16x32xf32> to vector<16x32xbf16>
    %cst_37 = arith.constant dense<0.000000e+00> : vector<16x32xf32>
    %74 = tpu.matmul %72, %73, %cst_37 {dimension_numbers = #tpu.dot_dimension_numbers<[1], [0], [0], [1], [0, 0, 1, 1], [], []>} : vector<16x16xbf16>, vector<16x32xbf16>, vector<16x32xf32> -> vector<16x32xf32>
    %75 = vector.broadcast %49 : vector<1x32xf32> to vector<16x32xf32>
    %76 = arith.addf %75, %74 : vector<16x32xf32>
    %77 = vector.extract_strided_slice %45 {offsets = [0, 16], sizes = [16, 16], strides = [1, 1]} : vector<16x96xf32> to vector<16x16xf32>
    %78 = vector.extract_strided_slice %45 {offsets = [0, 48], sizes = [16, 16], strides = [1, 1]} : vector<16x96xf32> to vector<16x16xf32>
    %79 = vector.extract_strided_slice %45 {offsets = [0, 80], sizes = [16, 16], strides = [1, 1]} : vector<16x96xf32> to vector<16x16xf32>
    %80 = arith.truncf %77 : vector<16x16xf32> to vector<16x16xbf16>
    %81 = arith.truncf %78 : vector<16x16xf32> to vector<16x16xbf16>
    %cst_38 = arith.constant dense<0.000000e+00> : vector<16x16xf32>
    %82 = tpu.matmul %80, %81, %cst_38 {dimension_numbers = #tpu.dot_dimension_numbers<[1], [1], [0], [0], [0, 0, 1, 0], [], []>} : vector<16x16xbf16>, vector<16x16xbf16>, vector<16x16xf32> -> vector<16x16xf32>
    %cst_39 = arith.constant 2.500000e-01 : f32
    %83 = vector.broadcast %cst_39 : f32 to vector<16x16xf32>
    %84 = arith.mulf %82, %83 : vector<16x16xf32>
    %cst_40 = arith.constant dense<0xFF800000> : vector<16xf32>
    %85 = vector.multi_reduction <maximumf>, %84, %cst_40 [1] : vector<16x16xf32> to vector<16xf32>
    %86 = vector.shape_cast %85 : vector<16xf32> to vector<16x1xf32>
    %87 = vector.broadcast %86 : vector<16x1xf32> to vector<16x16xf32>
    %88 = arith.subf %84, %87 : vector<16x16xf32>
    %89 = math.exp %88 : vector<16x16xf32>
    %cst_41 = arith.constant dense<0.000000e+00> : vector<16xf32>
    %90 = vector.multi_reduction <add>, %89, %cst_41 [1] : vector<16x16xf32> to vector<16xf32>
    %91 = vector.shape_cast %90 : vector<16xf32> to vector<16x1xf32>
    %92 = tpu.reciprocal %91 {approx = true} : vector<16x1xf32> -> vector<16x1xf32>
    %93 = vector.broadcast %92 : vector<16x1xf32> to vector<16x16xf32>
    %94 = arith.mulf %89, %93 : vector<16x16xf32>
    %95 = arith.truncf %94 : vector<16x16xf32> to vector<16x16xbf16>
    %96 = arith.truncf %79 : vector<16x16xf32> to vector<16x16xbf16>
    %cst_42 = arith.constant dense<0.000000e+00> : vector<16x16xf32>
    %97 = tpu.matmul %95, %96, %cst_42 {dimension_numbers = #tpu.dot_dimension_numbers<[1], [0], [0], [1], [0, 0, 1, 1], [], []>} : vector<16x16xbf16>, vector<16x16xbf16>, vector<16x16xf32> -> vector<16x16xf32>
    %98 = vector.extract_strided_slice %47 {offsets = [16, 0], sizes = [16, 32], strides = [1, 1]} : vector<32x32xf32> to vector<16x32xf32>
    %99 = arith.truncf %97 : vector<16x16xf32> to vector<16x16xbf16>
    %100 = arith.truncf %98 : vector<16x32xf32> to vector<16x32xbf16>
    %cst_43 = arith.constant dense<0.000000e+00> : vector<16x32xf32>
    %101 = tpu.matmul %99, %100, %cst_43 {dimension_numbers = #tpu.dot_dimension_numbers<[1], [0], [0], [1], [0, 0, 1, 1], [], []>} : vector<16x16xbf16>, vector<16x32xbf16>, vector<16x32xf32> -> vector<16x32xf32>
    %102 = arith.addf %76, %101 : vector<16x32xf32>
    %103 = arith.addf %10, %102 : vector<16x32xf32>
    %c0_44 = arith.constant 0 : index
    %c0_45 = arith.constant 0 : index
    %c0_46 = arith.constant 0 : index
    %104 = vector.load %arg11[%c0_44, %c0_45, %c0_46] : memref<2x1x32xf32, #tpu.memory_space<vmem>>, vector<1x1x32xf32>
    %105 = vector.shape_cast %104 : vector<1x1x32xf32> to vector<1x32xf32>
    %c0_47 = arith.constant 0 : index
    %c0_48 = arith.constant 0 : index
    %c0_49 = arith.constant 0 : index
    %106 = vector.load %arg12[%c0_47, %c0_48, %c0_49] : memref<2x1x32xf32, #tpu.memory_space<vmem>>, vector<1x1x32xf32>
    %107 = vector.shape_cast %106 : vector<1x1x32xf32> to vector<1x32xf32>
    %cst_50 = arith.constant dense<0.000000e+00> : vector<16xf32>
    %108 = vector.multi_reduction <add>, %103, %cst_50 [1] : vector<16x32xf32> to vector<16xf32>
    %109 = vector.shape_cast %108 : vector<16xf32> to vector<16x1xf32>
    %cst_51 = arith.constant 3.200000e+01 : f32
    %110 = vector.broadcast %cst_51 : f32 to vector<16x1xf32>
    %111 = arith.divf %109, %110 : vector<16x1xf32>
    %112 = vector.broadcast %111 : vector<16x1xf32> to vector<16x32xf32>
    %113 = arith.subf %103, %112 : vector<16x32xf32>
    %114 = arith.mulf %113, %113 : vector<16x32xf32>
    %cst_52 = arith.constant dense<0.000000e+00> : vector<16xf32>
    %115 = vector.multi_reduction <add>, %114, %cst_52 [1] : vector<16x32xf32> to vector<16xf32>
    %116 = vector.shape_cast %115 : vector<16xf32> to vector<16x1xf32>
    %cst_53 = arith.constant 3.200000e+01 : f32
    %117 = vector.broadcast %cst_53 : f32 to vector<16x1xf32>
    %118 = arith.divf %116, %117 : vector<16x1xf32>
    %119 = vector.broadcast %111 : vector<16x1xf32> to vector<16x32xf32>
    %120 = arith.subf %103, %119 : vector<16x32xf32>
    %cst_54 = arith.constant 9.99999997E-7 : f32
    %121 = vector.broadcast %cst_54 : f32 to vector<16x1xf32>
    %122 = arith.addf %118, %121 : vector<16x1xf32>
    %123 = math.rsqrt %122 : vector<16x1xf32>
    %124 = vector.broadcast %123 : vector<16x1xf32> to vector<16x32xf32>
    %125 = arith.mulf %120, %124 : vector<16x32xf32>
    %126 = vector.broadcast %105 : vector<1x32xf32> to vector<16x32xf32>
    %127 = arith.mulf %125, %126 : vector<16x32xf32>
    %128 = vector.broadcast %107 : vector<1x32xf32> to vector<16x32xf32>
    %129 = arith.addf %127, %128 : vector<16x32xf32>
    %c0_55 = arith.constant 0 : index
    %c0_56 = arith.constant 0 : index
    %c0_57 = arith.constant 0 : index
    %130 = vector.load %arg13[%c0_55, %c0_56, %c0_57] : memref<2x32x64xf32, #tpu.memory_space<vmem>>, vector<1x32x64xf32>
    %131 = vector.shape_cast %130 : vector<1x32x64xf32> to vector<32x64xf32>
    %132 = arith.truncf %129 : vector<16x32xf32> to vector<16x32xbf16>
    %133 = arith.truncf %131 : vector<32x64xf32> to vector<32x64xbf16>
    %cst_58 = arith.constant dense<0.000000e+00> : vector<16x64xf32>
    %134 = tpu.matmul %132, %133, %cst_58 {dimension_numbers = #tpu.dot_dimension_numbers<[1], [0], [0], [1], [0, 0, 1, 1], [], []>} : vector<16x32xbf16>, vector<32x64xbf16>, vector<16x64xf32> -> vector<16x64xf32>
    %c0_59 = arith.constant 0 : index
    %c0_60 = arith.constant 0 : index
    %c0_61 = arith.constant 0 : index
    %135 = vector.load %arg14[%c0_59, %c0_60, %c0_61] : memref<2x1x64xf32, #tpu.memory_space<vmem>>, vector<1x1x64xf32>
    %136 = vector.shape_cast %135 : vector<1x1x64xf32> to vector<1x64xf32>
    %137 = vector.broadcast %136 : vector<1x64xf32> to vector<16x64xf32>
    %138 = arith.addf %134, %137 : vector<16x64xf32>
    %139 = arith.mulf %138, %138 : vector<16x64xf32>
    %140 = arith.mulf %138, %139 : vector<16x64xf32>
    %cst_62 = arith.constant 4.471500e-02 : f32
    %141 = vector.broadcast %cst_62 : f32 to vector<16x64xf32>
    %142 = arith.mulf %141, %140 : vector<16x64xf32>
    %143 = arith.addf %138, %142 : vector<16x64xf32>
    %cst_63 = arith.constant 0.797884583 : f32
    %144 = vector.broadcast %cst_63 : f32 to vector<16x64xf32>
    %145 = arith.mulf %144, %143 : vector<16x64xf32>
    %146 = math.tanh %145 : vector<16x64xf32>
    %cst_64 = arith.constant 1.000000e+00 : f32
    %147 = vector.broadcast %cst_64 : f32 to vector<16x64xf32>
    %148 = arith.addf %147, %146 : vector<16x64xf32>
    %cst_65 = arith.constant 5.000000e-01 : f32
    %149 = vector.broadcast %cst_65 : f32 to vector<16x64xf32>
    %150 = arith.mulf %149, %148 : vector<16x64xf32>
    %151 = arith.mulf %138, %150 : vector<16x64xf32>
    %c0_66 = arith.constant 0 : index
    %c0_67 = arith.constant 0 : index
    %c0_68 = arith.constant 0 : index
    %152 = vector.load %arg15[%c0_66, %c0_67, %c0_68] : memref<2x64x32xf32, #tpu.memory_space<vmem>>, vector<1x64x32xf32>
    %153 = vector.shape_cast %152 : vector<1x64x32xf32> to vector<64x32xf32>
    %154 = arith.truncf %151 : vector<16x64xf32> to vector<16x64xbf16>
    %155 = arith.truncf %153 : vector<64x32xf32> to vector<64x32xbf16>
    %cst_69 = arith.constant dense<0.000000e+00> : vector<16x32xf32>
    %156 = tpu.matmul %154, %155, %cst_69 {dimension_numbers = #tpu.dot_dimension_numbers<[1], [0], [0], [1], [0, 0, 1, 1], [], []>} : vector<16x64xbf16>, vector<64x32xbf16>, vector<16x32xf32> -> vector<16x32xf32>
    %157 = arith.addf %103, %156 : vector<16x32xf32>
    %c0_70 = arith.constant 0 : index
    %c0_71 = arith.constant 0 : index
    %c0_72 = arith.constant 0 : index
    %158 = vector.load %arg16[%c0_70, %c0_71, %c0_72] : memref<2x1x32xf32, #tpu.memory_space<vmem>>, vector<1x1x32xf32>
    %159 = vector.shape_cast %158 : vector<1x1x32xf32> to vector<1x32xf32>
    %160 = vector.broadcast %159 : vector<1x32xf32> to vector<16x32xf32>
    %161 = arith.addf %157, %160 : vector<16x32xf32>
    %c1 = arith.constant 1 : index
    %c0_73 = arith.constant 0 : index
    %c0_74 = arith.constant 0 : index
    %162 = vector.load %arg5[%c1, %c0_73, %c0_74] : memref<2x1x32xf32, #tpu.memory_space<vmem>>, vector<1x1x32xf32>
    %163 = vector.shape_cast %162 : vector<1x1x32xf32> to vector<1x32xf32>
    %c1_75 = arith.constant 1 : index
    %c0_76 = arith.constant 0 : index
    %c0_77 = arith.constant 0 : index
    %164 = vector.load %arg6[%c1_75, %c0_76, %c0_77] : memref<2x1x32xf32, #tpu.memory_space<vmem>>, vector<1x1x32xf32>
    %165 = vector.shape_cast %164 : vector<1x1x32xf32> to vector<1x32xf32>
    %cst_78 = arith.constant dense<0.000000e+00> : vector<16xf32>
    %166 = vector.multi_reduction <add>, %161, %cst_78 [1] : vector<16x32xf32> to vector<16xf32>
    %167 = vector.shape_cast %166 : vector<16xf32> to vector<16x1xf32>
    %cst_79 = arith.constant 3.200000e+01 : f32
    %168 = vector.broadcast %cst_79 : f32 to vector<16x1xf32>
    %169 = arith.divf %167, %168 : vector<16x1xf32>
    %170 = vector.broadcast %169 : vector<16x1xf32> to vector<16x32xf32>
    %171 = arith.subf %161, %170 : vector<16x32xf32>
    %172 = arith.mulf %171, %171 : vector<16x32xf32>
    %cst_80 = arith.constant dense<0.000000e+00> : vector<16xf32>
    %173 = vector.multi_reduction <add>, %172, %cst_80 [1] : vector<16x32xf32> to vector<16xf32>
    %174 = vector.shape_cast %173 : vector<16xf32> to vector<16x1xf32>
    %cst_81 = arith.constant 3.200000e+01 : f32
    %175 = vector.broadcast %cst_81 : f32 to vector<16x1xf32>
    %176 = arith.divf %174, %175 : vector<16x1xf32>
    %177 = vector.broadcast %169 : vector<16x1xf32> to vector<16x32xf32>
    %178 = arith.subf %161, %177 : vector<16x32xf32>
    %cst_82 = arith.constant 9.99999997E-7 : f32
    %179 = vector.broadcast %cst_82 : f32 to vector<16x1xf32>
    %180 = arith.addf %176, %179 : vector<16x1xf32>
    %181 = math.rsqrt %180 : vector<16x1xf32>
    %182 = vector.broadcast %181 : vector<16x1xf32> to vector<16x32xf32>
    %183 = arith.mulf %178, %182 : vector<16x32xf32>
    %184 = vector.broadcast %163 : vector<1x32xf32> to vector<16x32xf32>
    %185 = arith.mulf %183, %184 : vector<16x32xf32>
    %186 = vector.broadcast %165 : vector<1x32xf32> to vector<16x32xf32>
    %187 = arith.addf %185, %186 : vector<16x32xf32>
    %c1_83 = arith.constant 1 : index
    %c0_84 = arith.constant 0 : index
    %c0_85 = arith.constant 0 : index
    %188 = vector.load %arg7[%c1_83, %c0_84, %c0_85] : memref<2x32x96xf32, #tpu.memory_space<vmem>>, vector<1x32x96xf32>
    %189 = vector.shape_cast %188 : vector<1x32x96xf32> to vector<32x96xf32>
    %190 = arith.truncf %187 : vector<16x32xf32> to vector<16x32xbf16>
    %191 = arith.truncf %189 : vector<32x96xf32> to vector<32x96xbf16>
    %cst_86 = arith.constant dense<0.000000e+00> : vector<16x96xf32>
    %192 = tpu.matmul %190, %191, %cst_86 {dimension_numbers = #tpu.dot_dimension_numbers<[1], [0], [0], [1], [0, 0, 1, 1], [], []>} : vector<16x32xbf16>, vector<32x96xbf16>, vector<16x96xf32> -> vector<16x96xf32>
    %c1_87 = arith.constant 1 : index
    %c0_88 = arith.constant 0 : index
    %c0_89 = arith.constant 0 : index
    %193 = vector.load %arg8[%c1_87, %c0_88, %c0_89] : memref<2x1x96xf32, #tpu.memory_space<vmem>>, vector<1x1x96xf32>
    %194 = vector.shape_cast %193 : vector<1x1x96xf32> to vector<1x96xf32>
    %195 = vector.broadcast %194 : vector<1x96xf32> to vector<16x96xf32>
    %196 = arith.addf %192, %195 : vector<16x96xf32>
    %c1_90 = arith.constant 1 : index
    %c0_91 = arith.constant 0 : index
    %c0_92 = arith.constant 0 : index
    %197 = vector.load %arg9[%c1_90, %c0_91, %c0_92] : memref<2x32x32xf32, #tpu.memory_space<vmem>>, vector<1x32x32xf32>
    %198 = vector.shape_cast %197 : vector<1x32x32xf32> to vector<32x32xf32>
    %c1_93 = arith.constant 1 : index
    %c0_94 = arith.constant 0 : index
    %c0_95 = arith.constant 0 : index
    %199 = vector.load %arg10[%c1_93, %c0_94, %c0_95] : memref<2x1x32xf32, #tpu.memory_space<vmem>>, vector<1x1x32xf32>
    %200 = vector.shape_cast %199 : vector<1x1x32xf32> to vector<1x32xf32>
    %201 = vector.extract_strided_slice %196 {offsets = [0, 0], sizes = [16, 16], strides = [1, 1]} : vector<16x96xf32> to vector<16x16xf32>
    %202 = vector.extract_strided_slice %196 {offsets = [0, 32], sizes = [16, 16], strides = [1, 1]} : vector<16x96xf32> to vector<16x16xf32>
    %203 = vector.extract_strided_slice %196 {offsets = [0, 64], sizes = [16, 16], strides = [1, 1]} : vector<16x96xf32> to vector<16x16xf32>
    %204 = arith.truncf %201 : vector<16x16xf32> to vector<16x16xbf16>
    %205 = arith.truncf %202 : vector<16x16xf32> to vector<16x16xbf16>
    %cst_96 = arith.constant dense<0.000000e+00> : vector<16x16xf32>
    %206 = tpu.matmul %204, %205, %cst_96 {dimension_numbers = #tpu.dot_dimension_numbers<[1], [1], [0], [0], [0, 0, 1, 0], [], []>} : vector<16x16xbf16>, vector<16x16xbf16>, vector<16x16xf32> -> vector<16x16xf32>
    %cst_97 = arith.constant 2.500000e-01 : f32
    %207 = vector.broadcast %cst_97 : f32 to vector<16x16xf32>
    %208 = arith.mulf %206, %207 : vector<16x16xf32>
    %cst_98 = arith.constant dense<0xFF800000> : vector<16xf32>
    %209 = vector.multi_reduction <maximumf>, %208, %cst_98 [1] : vector<16x16xf32> to vector<16xf32>
    %210 = vector.shape_cast %209 : vector<16xf32> to vector<16x1xf32>
    %211 = vector.broadcast %210 : vector<16x1xf32> to vector<16x16xf32>
    %212 = arith.subf %208, %211 : vector<16x16xf32>
    %213 = math.exp %212 : vector<16x16xf32>
    %cst_99 = arith.constant dense<0.000000e+00> : vector<16xf32>
    %214 = vector.multi_reduction <add>, %213, %cst_99 [1] : vector<16x16xf32> to vector<16xf32>
    %215 = vector.shape_cast %214 : vector<16xf32> to vector<16x1xf32>
    %216 = tpu.reciprocal %215 {approx = true} : vector<16x1xf32> -> vector<16x1xf32>
    %217 = vector.broadcast %216 : vector<16x1xf32> to vector<16x16xf32>
    %218 = arith.mulf %213, %217 : vector<16x16xf32>
    %219 = arith.truncf %218 : vector<16x16xf32> to vector<16x16xbf16>
    %220 = arith.truncf %203 : vector<16x16xf32> to vector<16x16xbf16>
    %cst_100 = arith.constant dense<0.000000e+00> : vector<16x16xf32>
    %221 = tpu.matmul %219, %220, %cst_100 {dimension_numbers = #tpu.dot_dimension_numbers<[1], [0], [0], [1], [0, 0, 1, 1], [], []>} : vector<16x16xbf16>, vector<16x16xbf16>, vector<16x16xf32> -> vector<16x16xf32>
    %222 = vector.extract_strided_slice %198 {offsets = [0, 0], sizes = [16, 32], strides = [1, 1]} : vector<32x32xf32> to vector<16x32xf32>
    %223 = arith.truncf %221 : vector<16x16xf32> to vector<16x16xbf16>
    %224 = arith.truncf %222 : vector<16x32xf32> to vector<16x32xbf16>
    %cst_101 = arith.constant dense<0.000000e+00> : vector<16x32xf32>
    %225 = tpu.matmul %223, %224, %cst_101 {dimension_numbers = #tpu.dot_dimension_numbers<[1], [0], [0], [1], [0, 0, 1, 1], [], []>} : vector<16x16xbf16>, vector<16x32xbf16>, vector<16x32xf32> -> vector<16x32xf32>
    %226 = vector.broadcast %200 : vector<1x32xf32> to vector<16x32xf32>
    %227 = arith.addf %226, %225 : vector<16x32xf32>
    %228 = vector.extract_strided_slice %196 {offsets = [0, 16], sizes = [16, 16], strides = [1, 1]} : vector<16x96xf32> to vector<16x16xf32>
    %229 = vector.extract_strided_slice %196 {offsets = [0, 48], sizes = [16, 16], strides = [1, 1]} : vector<16x96xf32> to vector<16x16xf32>
    %230 = vector.extract_strided_slice %196 {offsets = [0, 80], sizes = [16, 16], strides = [1, 1]} : vector<16x96xf32> to vector<16x16xf32>
    %231 = arith.truncf %228 : vector<16x16xf32> to vector<16x16xbf16>
    %232 = arith.truncf %229 : vector<16x16xf32> to vector<16x16xbf16>
    %cst_102 = arith.constant dense<0.000000e+00> : vector<16x16xf32>
    %233 = tpu.matmul %231, %232, %cst_102 {dimension_numbers = #tpu.dot_dimension_numbers<[1], [1], [0], [0], [0, 0, 1, 0], [], []>} : vector<16x16xbf16>, vector<16x16xbf16>, vector<16x16xf32> -> vector<16x16xf32>
    %cst_103 = arith.constant 2.500000e-01 : f32
    %234 = vector.broadcast %cst_103 : f32 to vector<16x16xf32>
    %235 = arith.mulf %233, %234 : vector<16x16xf32>
    %cst_104 = arith.constant dense<0xFF800000> : vector<16xf32>
    %236 = vector.multi_reduction <maximumf>, %235, %cst_104 [1] : vector<16x16xf32> to vector<16xf32>
    %237 = vector.shape_cast %236 : vector<16xf32> to vector<16x1xf32>
    %238 = vector.broadcast %237 : vector<16x1xf32> to vector<16x16xf32>
    %239 = arith.subf %235, %238 : vector<16x16xf32>
    %240 = math.exp %239 : vector<16x16xf32>
    %cst_105 = arith.constant dense<0.000000e+00> : vector<16xf32>
    %241 = vector.multi_reduction <add>, %240, %cst_105 [1] : vector<16x16xf32> to vector<16xf32>
    %242 = vector.shape_cast %241 : vector<16xf32> to vector<16x1xf32>
    %243 = tpu.reciprocal %242 {approx = true} : vector<16x1xf32> -> vector<16x1xf32>
    %244 = vector.broadcast %243 : vector<16x1xf32> to vector<16x16xf32>
    %245 = arith.mulf %240, %244 : vector<16x16xf32>
    %246 = arith.truncf %245 : vector<16x16xf32> to vector<16x16xbf16>
    %247 = arith.truncf %230 : vector<16x16xf32> to vector<16x16xbf16>
    %cst_106 = arith.constant dense<0.000000e+00> : vector<16x16xf32>
    %248 = tpu.matmul %246, %247, %cst_106 {dimension_numbers = #tpu.dot_dimension_numbers<[1], [0], [0], [1], [0, 0, 1, 1], [], []>} : vector<16x16xbf16>, vector<16x16xbf16>, vector<16x16xf32> -> vector<16x16xf32>
    %249 = vector.extract_strided_slice %198 {offsets = [16, 0], sizes = [16, 32], strides = [1, 1]} : vector<32x32xf32> to vector<16x32xf32>
    %250 = arith.truncf %248 : vector<16x16xf32> to vector<16x16xbf16>
    %251 = arith.truncf %249 : vector<16x32xf32> to vector<16x32xbf16>
    %cst_107 = arith.constant dense<0.000000e+00> : vector<16x32xf32>
    %252 = tpu.matmul %250, %251, %cst_107 {dimension_numbers = #tpu.dot_dimension_numbers<[1], [0], [0], [1], [0, 0, 1, 1], [], []>} : vector<16x16xbf16>, vector<16x32xbf16>, vector<16x32xf32> -> vector<16x32xf32>
    %253 = arith.addf %227, %252 : vector<16x32xf32>
    %254 = arith.addf %161, %253 : vector<16x32xf32>
    %c1_108 = arith.constant 1 : index
    %c0_109 = arith.constant 0 : index
    %c0_110 = arith.constant 0 : index
    %255 = vector.load %arg11[%c1_108, %c0_109, %c0_110] : memref<2x1x32xf32, #tpu.memory_space<vmem>>, vector<1x1x32xf32>
    %256 = vector.shape_cast %255 : vector<1x1x32xf32> to vector<1x32xf32>
    %c1_111 = arith.constant 1 : index
    %c0_112 = arith.constant 0 : index
    %c0_113 = arith.constant 0 : index
    %257 = vector.load %arg12[%c1_111, %c0_112, %c0_113] : memref<2x1x32xf32, #tpu.memory_space<vmem>>, vector<1x1x32xf32>
    %258 = vector.shape_cast %257 : vector<1x1x32xf32> to vector<1x32xf32>
    %cst_114 = arith.constant dense<0.000000e+00> : vector<16xf32>
    %259 = vector.multi_reduction <add>, %254, %cst_114 [1] : vector<16x32xf32> to vector<16xf32>
    %260 = vector.shape_cast %259 : vector<16xf32> to vector<16x1xf32>
    %cst_115 = arith.constant 3.200000e+01 : f32
    %261 = vector.broadcast %cst_115 : f32 to vector<16x1xf32>
    %262 = arith.divf %260, %261 : vector<16x1xf32>
    %263 = vector.broadcast %262 : vector<16x1xf32> to vector<16x32xf32>
    %264 = arith.subf %254, %263 : vector<16x32xf32>
    %265 = arith.mulf %264, %264 : vector<16x32xf32>
    %cst_116 = arith.constant dense<0.000000e+00> : vector<16xf32>
    %266 = vector.multi_reduction <add>, %265, %cst_116 [1] : vector<16x32xf32> to vector<16xf32>
    %267 = vector.shape_cast %266 : vector<16xf32> to vector<16x1xf32>
    %cst_117 = arith.constant 3.200000e+01 : f32
    %268 = vector.broadcast %cst_117 : f32 to vector<16x1xf32>
    %269 = arith.divf %267, %268 : vector<16x1xf32>
    %270 = vector.broadcast %262 : vector<16x1xf32> to vector<16x32xf32>
    %271 = arith.subf %254, %270 : vector<16x32xf32>
    %cst_118 = arith.constant 9.99999997E-7 : f32
    %272 = vector.broadcast %cst_118 : f32 to vector<16x1xf32>
    %273 = arith.addf %269, %272 : vector<16x1xf32>
    %274 = math.rsqrt %273 : vector<16x1xf32>
    %275 = vector.broadcast %274 : vector<16x1xf32> to vector<16x32xf32>
    %276 = arith.mulf %271, %275 : vector<16x32xf32>
    %277 = vector.broadcast %256 : vector<1x32xf32> to vector<16x32xf32>
    %278 = arith.mulf %276, %277 : vector<16x32xf32>
    %279 = vector.broadcast %258 : vector<1x32xf32> to vector<16x32xf32>
    %280 = arith.addf %278, %279 : vector<16x32xf32>
    %c1_119 = arith.constant 1 : index
    %c0_120 = arith.constant 0 : index
    %c0_121 = arith.constant 0 : index
    %281 = vector.load %arg13[%c1_119, %c0_120, %c0_121] : memref<2x32x64xf32, #tpu.memory_space<vmem>>, vector<1x32x64xf32>
    %282 = vector.shape_cast %281 : vector<1x32x64xf32> to vector<32x64xf32>
    %283 = arith.truncf %280 : vector<16x32xf32> to vector<16x32xbf16>
    %284 = arith.truncf %282 : vector<32x64xf32> to vector<32x64xbf16>
    %cst_122 = arith.constant dense<0.000000e+00> : vector<16x64xf32>
    %285 = tpu.matmul %283, %284, %cst_122 {dimension_numbers = #tpu.dot_dimension_numbers<[1], [0], [0], [1], [0, 0, 1, 1], [], []>} : vector<16x32xbf16>, vector<32x64xbf16>, vector<16x64xf32> -> vector<16x64xf32>
    %c1_123 = arith.constant 1 : index
    %c0_124 = arith.constant 0 : index
    %c0_125 = arith.constant 0 : index
    %286 = vector.load %arg14[%c1_123, %c0_124, %c0_125] : memref<2x1x64xf32, #tpu.memory_space<vmem>>, vector<1x1x64xf32>
    %287 = vector.shape_cast %286 : vector<1x1x64xf32> to vector<1x64xf32>
    %288 = vector.broadcast %287 : vector<1x64xf32> to vector<16x64xf32>
    %289 = arith.addf %285, %288 : vector<16x64xf32>
    %290 = arith.mulf %289, %289 : vector<16x64xf32>
    %291 = arith.mulf %289, %290 : vector<16x64xf32>
    %cst_126 = arith.constant 4.471500e-02 : f32
    %292 = vector.broadcast %cst_126 : f32 to vector<16x64xf32>
    %293 = arith.mulf %292, %291 : vector<16x64xf32>
    %294 = arith.addf %289, %293 : vector<16x64xf32>
    %cst_127 = arith.constant 0.797884583 : f32
    %295 = vector.broadcast %cst_127 : f32 to vector<16x64xf32>
    %296 = arith.mulf %295, %294 : vector<16x64xf32>
    %297 = math.tanh %296 : vector<16x64xf32>
    %cst_128 = arith.constant 1.000000e+00 : f32
    %298 = vector.broadcast %cst_128 : f32 to vector<16x64xf32>
    %299 = arith.addf %298, %297 : vector<16x64xf32>
    %cst_129 = arith.constant 5.000000e-01 : f32
    %300 = vector.broadcast %cst_129 : f32 to vector<16x64xf32>
    %301 = arith.mulf %300, %299 : vector<16x64xf32>
    %302 = arith.mulf %289, %301 : vector<16x64xf32>
    %c1_130 = arith.constant 1 : index
    %c0_131 = arith.constant 0 : index
    %c0_132 = arith.constant 0 : index
    %303 = vector.load %arg15[%c1_130, %c0_131, %c0_132] : memref<2x64x32xf32, #tpu.memory_space<vmem>>, vector<1x64x32xf32>
    %304 = vector.shape_cast %303 : vector<1x64x32xf32> to vector<64x32xf32>
    %305 = arith.truncf %302 : vector<16x64xf32> to vector<16x64xbf16>
    %306 = arith.truncf %304 : vector<64x32xf32> to vector<64x32xbf16>
    %cst_133 = arith.constant dense<0.000000e+00> : vector<16x32xf32>
    %307 = tpu.matmul %305, %306, %cst_133 {dimension_numbers = #tpu.dot_dimension_numbers<[1], [0], [0], [1], [0, 0, 1, 1], [], []>} : vector<16x64xbf16>, vector<64x32xbf16>, vector<16x32xf32> -> vector<16x32xf32>
    %308 = arith.addf %254, %307 : vector<16x32xf32>
    %c1_134 = arith.constant 1 : index
    %c0_135 = arith.constant 0 : index
    %c0_136 = arith.constant 0 : index
    %309 = vector.load %arg16[%c1_134, %c0_135, %c0_136] : memref<2x1x32xf32, #tpu.memory_space<vmem>>, vector<1x1x32xf32>
    %310 = vector.shape_cast %309 : vector<1x1x32xf32> to vector<1x32xf32>
    %311 = vector.broadcast %310 : vector<1x32xf32> to vector<16x32xf32>
    %312 = arith.addf %308, %311 : vector<16x32xf32>
    %c0_137 = arith.constant 0 : index
    %c0_138 = arith.constant 0 : index
    %313 = vector.load %arg17[%c0_137, %c0_138] : memref<1x32xf32, #tpu.memory_space<vmem>>, vector<1x32xf32>
    %c0_139 = arith.constant 0 : index
    %c0_140 = arith.constant 0 : index
    %314 = vector.load %arg18[%c0_139, %c0_140] : memref<1x32xf32, #tpu.memory_space<vmem>>, vector<1x32xf32>
    %cst_141 = arith.constant dense<0.000000e+00> : vector<16xf32>
    %315 = vector.multi_reduction <add>, %312, %cst_141 [1] : vector<16x32xf32> to vector<16xf32>
    %316 = vector.shape_cast %315 : vector<16xf32> to vector<16x1xf32>
    %cst_142 = arith.constant 3.200000e+01 : f32
    %317 = vector.broadcast %cst_142 : f32 to vector<16x1xf32>
    %318 = arith.divf %316, %317 : vector<16x1xf32>
    %319 = vector.broadcast %318 : vector<16x1xf32> to vector<16x32xf32>
    %320 = arith.subf %312, %319 : vector<16x32xf32>
    %321 = arith.mulf %320, %320 : vector<16x32xf32>
    %cst_143 = arith.constant dense<0.000000e+00> : vector<16xf32>
    %322 = vector.multi_reduction <add>, %321, %cst_143 [1] : vector<16x32xf32> to vector<16xf32>
    %323 = vector.shape_cast %322 : vector<16xf32> to vector<16x1xf32>
    %cst_144 = arith.constant 3.200000e+01 : f32
    %324 = vector.broadcast %cst_144 : f32 to vector<16x1xf32>
    %325 = arith.divf %323, %324 : vector<16x1xf32>
    %326 = vector.broadcast %318 : vector<16x1xf32> to vector<16x32xf32>
    %327 = arith.subf %312, %326 : vector<16x32xf32>
    %cst_145 = arith.constant 9.99999997E-7 : f32
    %328 = vector.broadcast %cst_145 : f32 to vector<16x1xf32>
    %329 = arith.addf %325, %328 : vector<16x1xf32>
    %330 = math.rsqrt %329 : vector<16x1xf32>
    %331 = vector.broadcast %330 : vector<16x1xf32> to vector<16x32xf32>
    %332 = arith.mulf %327, %331 : vector<16x32xf32>
    %333 = vector.broadcast %313 : vector<1x32xf32> to vector<16x32xf32>
    %334 = arith.mulf %332, %333 : vector<16x32xf32>
    %335 = vector.broadcast %314 : vector<1x32xf32> to vector<16x32xf32>
    %336 = arith.addf %334, %335 : vector<16x32xf32>
    %c0_146 = arith.constant 0 : index
    %c0_147 = arith.constant 0 : index
    %337 = vector.load %arg19[%c0_146, %c0_147] : memref<32x32xf32, #tpu.memory_space<vmem>>, vector<32x32xf32>
    %338 = arith.truncf %336 : vector<16x32xf32> to vector<16x32xbf16>
    %339 = arith.truncf %337 : vector<32x32xf32> to vector<32x32xbf16>
    %cst_148 = arith.constant dense<0.000000e+00> : vector<16x32xf32>
    %340 = tpu.matmul %338, %339, %cst_148 {dimension_numbers = #tpu.dot_dimension_numbers<[1], [0], [0], [1], [0, 0, 1, 1], [], []>} : vector<16x32xbf16>, vector<32x32xbf16>, vector<16x32xf32> -> vector<16x32xf32>
    %c0_149 = arith.constant 0 : index
    %c0_150 = arith.constant 0 : index
    %341 = vector.load %arg20[%c0_149, %c0_150] : memref<1x32xf32, #tpu.memory_space<vmem>>, vector<1x32xf32>
    %342 = vector.broadcast %341 : vector<1x32xf32> to vector<16x32xf32>
    %343 = arith.addf %340, %342 : vector<16x32xf32>
    %c0_151 = arith.constant 0 : index
    %c0_152 = arith.constant 0 : index
    %c0_153 = arith.constant 0 : index
    %344 = vector.load %arg21[%c0_151, %c0_152, %c0_153] : memref<1x16x32xf32, #tpu.memory_space<vmem>>, vector<1x16x32xf32>
    %345 = vector.shape_cast %344 : vector<1x16x32xf32> to vector<16x32xf32>
    %346 = vector.shape_cast %343 : vector<16x32xf32> to vector<1x16x32xf32>
    tpu.vector_store %arg21[%c0_151, %c0_152, %c0_153], %346 {strides = array<i32>} : memref<1x16x32xf32, #tpu.memory_space<vmem>>, vector<1x16x32xf32>,
    return
  }
  func.func @transform_0(%arg0: i32) -> (i32, i32, i32) {
    %c0_i32 = arith.constant 0 : i32
    %c0_i32_0 = arith.constant 0 : i32
    %c0_i32_1 = arith.constant 0 : i32
    return %arg0, %c0_i32, %c0_i32_0 : i32, i32, i32
  }
  func.func @transform_1(%arg0: i32) -> (i32, i32) {
    %c0_i32 = arith.constant 0 : i32
    %c0_i32_0 = arith.constant 0 : i32
    %c0_i32_1 = arith.constant 0 : i32
    return %c0_i32, %c0_i32_0 : i32, i32
  }
  func.func @transform_2(%arg0: i32) -> (i32, i32) {
    %c0_i32 = arith.constant 0 : i32
    %c0_i32_0 = arith.constant 0 : i32
    %c0_i32_1 = arith.constant 0 : i32
    return %c0_i32, %c0_i32_0 : i32, i32
  }
  func.func @transform_3(%arg0: i32) -> (i32, i32) {
    %c0_i32 = arith.constant 0 : i32
    %c0_i32_0 = arith.constant 0 : i32
    %c0_i32_1 = arith.constant 0 : i32
    return %c0_i32, %c0_i32_0 : i32, i32
  }
  func.func @transform_4(%arg0: i32) -> (i32, i32, i32) {
    %c0_i32 = arith.constant 0 : i32
    %c0_i32_0 = arith.constant 0 : i32
    %c0_i32_1 = arith.constant 0 : i32
    %c0_i32_2 = arith.constant 0 : i32
    return %c0_i32, %c0_i32_0, %c0_i32_1 : i32, i32, i32
  }
  func.func @transform_5(%arg0: i32) -> (i32, i32, i32) {
    %c0_i32 = arith.constant 0 : i32
    %c0_i32_0 = arith.constant 0 : i32
    %c0_i32_1 = arith.constant 0 : i32
    %c0_i32_2 = arith.constant 0 : i32
    return %c0_i32, %c0_i32_0, %c0_i32_1 : i32, i32, i32
  }
  func.func @transform_6(%arg0: i32) -> (i32, i32, i32) {
    %c0_i32 = arith.constant 0 : i32
    %c0_i32_0 = arith.constant 0 : i32
    %c0_i32_1 = arith.constant 0 : i32
    %c0_i32_2 = arith.constant 0 : i32
    return %c0_i32, %c0_i32_0, %c0_i32_1 : i32, i32, i32
  }
  func.func @transform_7(%arg0: i32) -> (i32, i32, i32) {
    %c0_i32 = arith.constant 0 : i32
    %c0_i32_0 = arith.constant 0 : i32
    %c0_i32_1 = arith.constant 0 : i32
    %c0_i32_2 = arith.constant 0 : i32
    return %c0_i32, %c0_i32_0, %c0_i32_1 : i32, i32, i32
  }
  func.func @transform_8(%arg0: i32) -> (i32, i32, i32) {
    %c0_i32 = arith.constant 0 : i32
    %c0_i32_0 = arith.constant 0 : i32
    %c0_i32_1 = arith.constant 0 : i32
    %c0_i32_2 = arith.constant 0 : i32
    return %c0_i32, %c0_i32_0, %c0_i32_1 : i32, i32, i32
  }
  func.func @transform_9(%arg0: i32) -> (i32, i32, i32) {
    %c0_i32 = arith.constant 0 : i32
    %c0_i32_0 = arith.constant 0 : i32
    %c0_i32_1 = arith.constant 0 : i32
    %c0_i32_2 = arith.constant 0 : i32
    return %c0_i32, %c0_i32_0, %c0_i32_1 : i32, i32, i32
  }
  func.func @transform_10(%arg0: i32) -> (i32, i32, i32) {
    %c0_i32 = arith.constant 0 : i32
    %c0_i32_0 = arith.constant 0 : i32
    %c0_i32_1 = arith.constant 0 : i32
    %c0_i32_2 = arith.constant 0 : i32
    return %c0_i32, %c0_i32_0, %c0_i32_1 : i32, i32, i32
  }
  func.func @transform_11(%arg0: i32) -> (i32, i32, i32) {
    %c0_i32 = arith.constant 0 : i32
    %c0_i32_0 = arith.constant 0 : i32
    %c0_i32_1 = arith.constant 0 : i32
    %c0_i32_2 = arith.constant 0 : i32
    return %c0_i32, %c0_i32_0, %c0_i32_1 : i32, i32, i32
  }
  func.func @transform_12(%arg0: i32) -> (i32, i32, i32) {
    %c0_i32 = arith.constant 0 : i32
    %c0_i32_0 = arith.constant 0 : i32
    %c0_i32_1 = arith.constant 0 : i32
    %c0_i32_2 = arith.constant 0 : i32
    return %c0_i32, %c0_i32_0, %c0_i32_1 : i32, i32, i32
  }
  func.func @transform_13(%arg0: i32) -> (i32, i32, i32) {
    %c0_i32 = arith.constant 0 : i32
    %c0_i32_0 = arith.constant 0 : i32
    %c0_i32_1 = arith.constant 0 : i32
    %c0_i32_2 = arith.constant 0 : i32
    return %c0_i32, %c0_i32_0, %c0_i32_1 : i32, i32, i32
  }
  func.func @transform_14(%arg0: i32) -> (i32, i32, i32) {
    %c0_i32 = arith.constant 0 : i32
    %c0_i32_0 = arith.constant 0 : i32
    %c0_i32_1 = arith.constant 0 : i32
    %c0_i32_2 = arith.constant 0 : i32
    return %c0_i32, %c0_i32_0, %c0_i32_1 : i32, i32, i32
  }
  func.func @transform_15(%arg0: i32) -> (i32, i32, i32) {
    %c0_i32 = arith.constant 0 : i32
    %c0_i32_0 = arith.constant 0 : i32
    %c0_i32_1 = arith.constant 0 : i32
    %c0_i32_2 = arith.constant 0 : i32
    return %c0_i32, %c0_i32_0, %c0_i32_1 : i32, i32, i32
  }
  func.func @transform_16(%arg0: i32) -> (i32, i32) {
    %c0_i32 = arith.constant 0 : i32
    %c0_i32_0 = arith.constant 0 : i32
    %c0_i32_1 = arith.constant 0 : i32
    return %c0_i32, %c0_i32_0 : i32, i32
  }
  func.func @transform_17(%arg0: i32) -> (i32, i32) {
    %c0_i32 = arith.constant 0 : i32
    %c0_i32_0 = arith.constant 0 : i32
    %c0_i32_1 = arith.constant 0 : i32
    return %c0_i32, %c0_i32_0 : i32, i32
  }
  func.func @transform_18(%arg0: i32) -> (i32, i32) {
    %c0_i32 = arith.constant 0 : i32
    %c0_i32_0 = arith.constant 0 : i32
    %c0_i32_1 = arith.constant 0 : i32
    return %c0_i32, %c0_i32_0 : i32, i32
  }
  func.func @transform_19(%arg0: i32) -> (i32, i32) {
    %c0_i32 = arith.constant 0 : i32
    %c0_i32_0 = arith.constant 0 : i32
    %c0_i32_1 = arith.constant 0 : i32
    return %c0_i32, %c0_i32_0 : i32, i32
  }
  func.func @transform_20(%arg0: i32) -> (i32, i32, i32) {
    %c0_i32 = arith.constant 0 : i32
    %c0_i32_0 = arith.constant 0 : i32
    %c0_i32_1 = arith.constant 0 : i32
    return %arg0, %c0_i32, %c0_i32_0 : i32, i32, i32
  }
}

</mosaic_0001>

<llo_original>
// kernel: vit_engine_forward.1
$region0: #{vit_engine_forward.1}
  #allocation0 [shape = 'u32[]', space=smem, size = 0x4, offset = 0x4, fixed_abs, tag = 'smem constant byte address 0x4 - core index']
  #allocation1 [shape = 'u32[144,128]{1,0:T(1,128)}', space=vmem, size = 0x12000, scoped, tag = 'internal scratch']
  %s0 = inlined_call_operand.vmem [shape: f32[2,16,48], index: 0, kind: input, shape index: {}]
  %s1 = inlined_call_operand.vmem [shape: f32[16,32], index: 1, kind: input, shape index: {}]
  %s2 = inlined_call_operand.vmem [shape: f32[48,32], index: 2, kind: input, shape index: {}]
  %s3 = inlined_call_operand.vmem [shape: f32[1,32], index: 3, kind: input, shape index: {}]
  %s4 = inlined_call_operand.vmem [shape: f32[2,1,32], index: 4, kind: input, shape index: {}]
  %s5 = inlined_call_operand.vmem [shape: f32[2,1,32], index: 5, kind: input, shape index: {}]
  %s6 = inlined_call_operand.vmem [shape: f32[2,32,96], index: 6, kind: input, shape index: {}]
  %s7 = inlined_call_operand.vmem [shape: f32[2,1,96], index: 7, kind: input, shape index: {}]
  %s8 = inlined_call_operand.vmem [shape: f32[2,32,32], index: 8, kind: input, shape index: {}]
  %s9 = inlined_call_operand.vmem [shape: f32[2,1,32], index: 9, kind: input, shape index: {}]
  %s10 = inlined_call_operand.vmem [shape: f32[2,1,32], index: 10, kind: input, shape index: {}]
  %s11 = inlined_call_operand.vmem [shape: f32[2,1,32], index: 11, kind: input, shape index: {}]
  %s12 = inlined_call_operand.vmem [shape: f32[2,32,64], index: 12, kind: input, shape index: {}]
  %s13 = inlined_call_operand.vmem [shape: f32[2,1,64], index: 13, kind: input, shape index: {}]
  %s14 = inlined_call_operand.vmem [shape: f32[2,64,32], index: 14, kind: input, shape index: {}]
  %s15 = inlined_call_operand.vmem [shape: f32[2,1,32], index: 15, kind: input, shape index: {}]
  %s16 = inlined_call_operand.vmem [shape: f32[1,32], index: 16, kind: input, shape index: {}]
  %s17 = inlined_call_operand.vmem [shape: f32[1,32], index: 17, kind: input, shape index: {}]
  %s18 = inlined_call_operand.vmem [shape: f32[32,32], index: 18, kind: input, shape index: {}]
  %s19 = inlined_call_operand.vmem [shape: f32[1,32], index: 19, kind: input, shape index: {}]
  %s20 = inlined_call_operand.hbm [shape: f32[2,16,32], index: 20, kind: output, shape index: {}]
  %s21 = sld [smem:[#allocation0]]
  $region113: #{vit_engine_forward.1} parent=0
    _
  %s23 = ssub.s32 1, %s21
  %s24 = scalar_select 0, %s23, %s21
  $region1: #{vit_engine_forward.1} parent=0
    #allocation2 [shape = 'u8[16384]{0}', space=vmem, size = 0x4000, scoped, tag = 'output window, operand 0']
    #allocation3 [shape = 's32[2]{0}', space=sflag, size = 0x8, scoped, tag = 'scoped memory for vit_engine_forward.1']
    %25 = vsyncpa [#allocation3], 0
    %s26 = scalar_lea.sflag [#allocation3], 1
    %27 = vsyncpa %s26, 0
    loop: start=0, step=1, limit=4
    $region2: #{vit_engine_forward.1} parent=1 // loop_pre_header
      _
    $region3: #{vit_engine_forward.1} parent=1 // loop_header
      %s29 = sphi 0, %s33
      %p30 = scmp.ge.s32.totalorder %s29, 4
      %s39 = sphi 0, %s41
      %s42 = sphi 0, %s39
      %s43 = sphi 0, %s42
      %s59 = sphi 0, %s43
      %s63 = sphi 0, %s63
      %s65 = sphi 0, %s63
      %s66 = sphi 0, %s65
      %s80 = sphi 0, %s66
      %s84 = sphi 0, %s84
      %s86 = sphi 0, %s84
      %s87 = sphi 0, %s86
      %s101 = sphi 0, %s87
      %s105 = sphi 0, %s105
      %s107 = sphi 0, %s105
      %s108 = sphi 0, %s107
      %s122 = sphi 0, %s108
      %s126 = sphi 0, %s126
      %s128 = sphi 0, %s126
      %s129 = sphi 0, %s128
      %s143 = sphi 0, %s129
      %s147 = sphi 0, %s147
      %s149 = sphi 0, %s147
      %s150 = sphi 0, %s149
      %s164 = sphi 0, %s150
      %s168 = sphi 0, %s168
      %s170 = sphi 0, %s168
      %s171 = sphi 0, %s170
      %s185 = sphi 0, %s171
      %s189 = sphi 0, %s189
      %s191 = sphi 0, %s189
      %s192 = sphi 0, %s191
      %s206 = sphi 0, %s192
      %s210 = sphi 0, %s210
      %s212 = sphi 0, %s210
      %s213 = sphi 0, %s212
      %s227 = sphi 0, %s213
      %s231 = sphi 0, %s231
      %s233 = sphi 0, %s231
      %s234 = sphi 0, %s233
      %s248 = sphi 0, %s234
      %s252 = sphi 0, %s252
      %s254 = sphi 0, %s252
      %s255 = sphi 0, %s254
      %s269 = sphi 0, %s255
      %s273 = sphi 0, %s273
      %s275 = sphi 0, %s273
      %s276 = sphi 0, %s275
      %s290 = sphi 0, %s276
      %s294 = sphi 0, %s294
      %s296 = sphi 0, %s294
      %s297 = sphi 0, %s296
      %s311 = sphi 0, %s297
      %s315 = sphi 0, %s315
      %s317 = sphi 0, %s315
      %s318 = sphi 0, %s317
      %s332 = sphi 0, %s318
      %s336 = sphi 0, %s336
      %s338 = sphi 0, %s336
      %s339 = sphi 0, %s338
      %s353 = sphi 0, %s339
      %s357 = sphi 0, %s357
      %s359 = sphi 0, %s357
      %s360 = sphi 0, %s359
      %s374 = sphi 0, %s360
      %s378 = sphi 0, %s378
      %s380 = sphi 0, %s378
      %s381 = sphi 0, %s380
      %s395 = sphi 0, %s381
      %s399 = sphi 0, %s399
      %s401 = sphi 0, %s399
      %s402 = sphi 0, %s401
      %s416 = sphi 0, %s402
      %s420 = sphi 0, %s420
      %s422 = sphi 0, %s420
      %s423 = sphi 0, %s422
      %s437 = sphi 0, %s423
      %s441 = sphi 0, %s441
      %s443 = sphi 0, %s441
      %s444 = sphi 0, %s443
      %s458 = sphi 0, %s444
      %s464 = sphi 0, %s466
      %s467 = sphi 0, %s464
      %s468 = sphi 0, %s467
      %s484 = sphi 0, %s468
    $region4: #{vit_engine_forward.1} parent=1 // loop_header_branch
      %32 = sbr.rel (%p30) target = $region8
    $region5: #{vit_engine_forward.1} parent=1 // loop_body
      %s34 = ssub.s32 %s29, 1
      %s35 = ssub.s32 %s29, 2
      %s36 = sadd.s32 %s29, 1
      %s37 = ssub.s32 %s29, %s36
      %p38 = scmp.eq.s32.totalorder %s37, 0
      %s40 = sadd.s32 %s39, 1
      %s41 = scalar_select %p38, %s39, %s40
      %p44 = pneg %p38
      %p45 = scmp.eq.s32.totalorder %s29, 1
      %p46 = por %p44, %p45
      %p47 = scmp.ne.s32.totalorder %s39, %s42
      %p48 = scmp.eq.s32.totalorder %s29, 0
      %p49 = por %p47, %p48
      %p50 = scmp.ne.s32.totalorder %s39, %s42
      %p51 = scmp.eq.s32.totalorder %s34, 1
      %p52 = por %p50, %p51
      %p53 = scmp.ne.s32.totalorder %s42, %s43
      %p54 = scmp.eq.s32.totalorder %s34, 0
      %p55 = por %p53, %p54
      %p56 = scmp.ne.s32.totalorder %s42, %s43
      %p57 = scmp.eq.s32.totalorder %s35, 1
      %p58 = por %p56, %p57
      %p60 = scmp.ne.s32.totalorder %s43, %s59
      %p61 = scmp.eq.s32.totalorder %s35, 0
      %p62 = por %p60, %p61
      %s64 = sadd.s32 %s63, 1
      %p67 = scmp.eq.s32.totalorder %s29, 1
      %p68 = scmp.ne.s32.totalorder %s63, %s65
      %p69 = scmp.eq.s32.totalorder %s29, 0
      %p70 = por %p68, %p69
      %p71 = scmp.ne.s32.totalorder %s63, %s65
      %p72 = scmp.eq.s32.totalorder %s34, 1
      %p73 = por %p71, %p72
      %p74 = scmp.ne.s32.totalorder %s65, %s66
      %p75 = scmp.eq.s32.totalorder %s34, 0
      %p76 = por %p74, %p75
      %p77 = scmp.ne.s32.totalorder %s65, %s66
      %p78 = scmp.eq.s32.totalorder %s35, 1
      %p79 = por %p77, %p78
      %p81 = scmp.ne.s32.totalorder %s66, %s80
      %p82 = scmp.eq.s32.totalorder %s35, 0
      %p83 = por %p81, %p82
      %s85 = sadd.s32 %s84, 1
      %p88 = scmp.eq.s32.totalorder %s29, 1
      %p89 = scmp.ne.s32.totalorder %s84, %s86
      %p90 = scmp.eq.s32.totalorder %s29, 0
      %p91 = por %p89, %p90
      %p92 = scmp.ne.s32.totalorder %s84, %s86
      %p93 = scmp.eq.s32.totalorder %s34, 1
      %p94 = por %p92, %p93
      %p95 = scmp.ne.s32.totalorder %s86, %s87
      %p96 = scmp.eq.s32.totalorder %s34, 0
      %p97 = por %p95, %p96
      %p98 = scmp.ne.s32.totalorder %s86, %s87
      %p99 = scmp.eq.s32.totalorder %s35, 1
      %p100 = por %p98, %p99
      %p102 = scmp.ne.s32.totalorder %s87, %s101
      %p103 = scmp.eq.s32.totalorder %s35, 0
      %p104 = por %p102, %p103
      %s106 = sadd.s32 %s105, 1
      %p109 = scmp.eq.s32.totalorder %s29, 1
      %p110 = scmp.ne.s32.totalorder %s105, %s107
      %p111 = scmp.eq.s32.totalorder %s29, 0
      %p112 = por %p110, %p111
      %p113 = scmp.ne.s32.totalorder %s105, %s107
      %p114 = scmp.eq.s32.totalorder %s34, 1
      %p115 = por %p113, %p114
      %p116 = scmp.ne.s32.totalorder %s107, %s108
      %p117 = scmp.eq.s32.totalorder %s34, 0
      %p118 = por %p116, %p117
      %p119 = scmp.ne.s32.totalorder %s107, %s108
      %p120 = scmp.eq.s32.totalorder %s35, 1
      %p121 = por %p119, %p120
      %p123 = scmp.ne.s32.totalorder %s108, %s122
      %p124 = scmp.eq.s32.totalorder %s35, 0
      %p125 = por %p123, %p124
      %s127 = sadd.s32 %s126, 1
      %p130 = scmp.eq.s32.totalorder %s29, 1
      %p131 = scmp.ne.s32.totalorder %s126, %s128
      %p132 = scmp.eq.s32.totalorder %s29, 0
      %p133 = por %p131, %p132
      %p134 = scmp.ne.s32.totalorder %s126, %s128
      %p135 = scmp.eq.s32.totalorder %s34, 1
      %p136 = por %p134, %p135
      %p137 = scmp.ne.s32.totalorder %s128, %s129
      %p138 = scmp.eq.s32.totalorder %s34, 0
      %p139 = por %p137, %p138
      %p140 = scmp.ne.s32.totalorder %s128, %s129
      %p141 = scmp.eq.s32.totalorder %s35, 1
      %p142 = por %p140, %p141
      %p144 = scmp.ne.s32.totalorder %s129, %s143
      %p145 = scmp.eq.s32.totalorder %s35, 0
      %p146 = por %p144, %p145
      %s148 = sadd.s32 %s147, 1
      %p151 = scmp.eq.s32.totalorder %s29, 1
      %p152 = scmp.ne.s32.totalorder %s147, %s149
      %p153 = scmp.eq.s32.totalorder %s29, 0
      %p154 = por %p152, %p153
      %p155 = scmp.ne.s32.totalorder %s147, %s149
      %p156 = scmp.eq.s32.totalorder %s34, 1
      %p157 = por %p155, %p156
      %p158 = scmp.ne.s32.totalorder %s149, %s150
      %p159 = scmp.eq.s32.totalorder %s34, 0
      %p160 = por %p158, %p159
      %p161 = scmp.ne.s32.totalorder %s149, %s150
      %p162 = scmp.eq.s32.totalorder %s35, 1
      %p163 = por %p161, %p162
      %p165 = scmp.ne.s32.totalorder %s150, %s164
      %p166 = scmp.eq.s32.totalorder %s35, 0
      %p167 = por %p165, %p166
      %s169 = sadd.s32 %s168, 1
      %p172 = scmp.eq.s32.totalorder %s29, 1
      %p173 = scmp.ne.s32.totalorder %s168, %s170
      %p174 = scmp.eq.s32.totalorder %s29, 0
      %p175 = por %p173, %p174
      %p176 = scmp.ne.s32.totalorder %s168, %s170
      %p177 = scmp.eq.s32.totalorder %s34, 1
      %p178 = por %p176, %p177
      %p179 = scmp.ne.s32.totalorder %s170, %s171
      %p180 = scmp.eq.s32.totalorder %s34, 0
      %p181 = por %p179, %p180
      %p182 = scmp.ne.s32.totalorder %s170, %s171
      %p183 = scmp.eq.s32.totalorder %s35, 1
      %p184 = por %p182, %p183
      %p186 = scmp.ne.s32.totalorder %s171, %s185
      %p187 = scmp.eq.s32.totalorder %s35, 0
      %p188 = por %p186, %p187
      %s190 = sadd.s32 %s189, 1
      %p193 = scmp.eq.s32.totalorder %s29, 1
      %p194 = scmp.ne.s32.totalorder %s189, %s191
      %p195 = scmp.eq.s32.totalorder %s29, 0
      %p196 = por %p194, %p195
      %p197 = scmp.ne.s32.totalorder %s189, %s191
      %p198 = scmp.eq.s32.totalorder %s34, 1
      %p199 = por %p197, %p198
      %p200 = scmp.ne.s32.totalorder %s191, %s192
      %p201 = scmp.eq.s32.totalorder %s34, 0
      %p202 = por %p200, %p201
      %p203 = scmp.ne.s32.totalorder %s191, %s192
      %p204 = scmp.eq.s32.totalorder %s35, 1
      %p205 = por %p203, %p204
      %p207 = scmp.ne.s32.totalorder %s192, %s206
      %p208 = scmp.eq.s32.totalorder %s35, 0
      %p209 = por %p207, %p208
      %s211 = sadd.s32 %s210, 1
      %p214 = scmp.eq.s32.totalorder %s29, 1
      %p215 = scmp.ne.s32.totalorder %s210, %s212
      %p216 = scmp.eq.s32.totalorder %s29, 0
      %p217 = por %p215, %p216
      %p218 = scmp.ne.s32.totalorder %s210, %s212
      %p219 = scmp.eq.s32.totalorder %s34, 1
      %p220 = por %p218, %p219
      %p221 = scmp.ne.s32.totalorder %s212, %s213
      %p222 = scmp.eq.s32.totalorder %s34, 0
      %p223 = por %p221, %p222
      %p224 = scmp.ne.s32.totalorder %s212, %s213
      %p225 = scmp.eq.s32.totalorder %s35, 1
      %p226 = por %p224, %p225
      %p228 = scmp.ne.s32.totalorder %s213, %s227
      %p229 = scmp.eq.s32.totalorder %s35, 0
      %p230 = por %p228, %p229
      %s232 = sadd.s32 %s231, 1
      %p235 = scmp.eq.s32.totalorder %s29, 1
      %p236 = scmp.ne.s32.totalorder %s231, %s233
      %p237 = scmp.eq.s32.totalorder %s29, 0
      %p238 = por %p236, %p237
      %p239 = scmp.ne.s32.totalorder %s231, %s233
      %p240 = scmp.eq.s32.totalorder %s34, 1
      %p241 = por %p239, %p240
      %p242 = scmp.ne.s32.totalorder %s233, %s234
      %p243 = scmp.eq.s32.totalorder %s34, 0
      %p244 = por %p242, %p243
      %p245 = scmp.ne.s32.totalorder %s233, %s234
      %p246 = scmp.eq.s32.totalorder %s35, 1
      %p247 = por %p245, %p246
      %p249 = scmp.ne.s32.totalorder %s234, %s248
      %p250 = scmp.eq.s32.totalorder %s35, 0
      %p251 = por %p249, %p250
      %s253 = sadd.s32 %s252, 1
      %p256 = scmp.eq.s32.totalorder %s29, 1
      %p257 = scmp.ne.s32.totalorder %s252, %s254
      %p258 = scmp.eq.s32.totalorder %s29, 0
      %p259 = por %p257, %p258
      %p260 = scmp.ne.s32.totalorder %s252, %s254
      %p261 = scmp.eq.s32.totalorder %s34, 1
      %p262 = por %p260, %p261
      %p263 = scmp.ne.s32.totalorder %s254, %s255
      %p264 = scmp.eq.s32.totalorder %s34, 0
      %p265 = por %p263, %p264
      %p266 = scmp.ne.s32.totalorder %s254, %s255
      %p267 = scmp.eq.s32.totalorder %s35, 1
      %p268 = por %p266, %p267
      %p270 = scmp.ne.s32.totalorder %s255, %s269
      %p271 = scmp.eq.s32.totalorder %s35, 0
      %p272 = por %p270, %p271
      %s274 = sadd.s32 %s273, 1
      %p277 = scmp.eq.s32.totalorder %s29, 1
      %p278 = scmp.ne.s32.totalorder %s273, %s275
      %p279 = scmp.eq.s32.totalorder %s29, 0
      %p280 = por %p278, %p279
      %p281 = scmp.ne.s32.totalorder %s273, %s275
      %p282 = scmp.eq.s32.totalorder %s34, 1
      %p283 = por %p281, %p282
      %p284 = scmp.ne.s32.totalorder %s275, %s276
      %p285 = scmp.eq.s32.totalorder %s34, 0
      %p286 = por %p284, %p285
      %p287 = scmp.ne.s32.totalorder %s275, %s276
      %p288 = scmp.eq.s32.totalorder %s35, 1
      %p289 = por %p287, %p288
      %p291 = scmp.ne.s32.totalorder %s276, %s290
      %p292 = scmp.eq.s32.totalorder %s35, 0
      %p293 = por %p291, %p292
      %s295 = sadd.s32 %s294, 1
      %p298 = scmp.eq.s32.totalorder %s29, 1
      %p299 = scmp.ne.s32.totalorder %s294, %s296
      %p300 = scmp.eq.s32.totalorder %s29, 0
      %p301 = por %p299, %p300
      %p302 = scmp.ne.s32.totalorder %s294, %s296
      %p303 = scmp.eq.s32.totalorder %s34, 1
      %p304 = por %p302, %p303
      %p305 = scmp.ne.s32.totalorder %s296, %s297
      %p306 = scmp.eq.s32.totalorder %s34, 0
      %p307 = por %p305, %p306
      %p308 = scmp.ne.s32.totalorder %s296, %s297
      %p309 = scmp.eq.s32.totalorder %s35, 1
      %p310 = por %p308, %p309
      %p312 = scmp.ne.s32.totalorder %s297, %s311
      %p313 = scmp.eq.s32.totalorder %s35, 0
      %p314 = por %p312, %p313
      %s316 = sadd.s32 %s315, 1
      %p319 = scmp.eq.s32.totalorder %s29, 1
      %p320 = scmp.ne.s32.totalorder %s315, %s317
      %p321 = scmp.eq.s32.totalorder %s29, 0
      %p322 = por %p320, %p321
      %p323 = scmp.ne.s32.totalorder %s315, %s317
      %p324 = scmp.eq.s32.totalorder %s34, 1
      %p325 = por %p323, %p324
      %p326 = scmp.ne.s32.totalorder %s317, %s318
      %p327 = scmp.eq.s32.totalorder %s34, 0
      %p328 = por %p326, %p327
      %p329 = scmp.ne.s32.totalorder %s317, %s318
      %p330 = scmp.eq.s32.totalorder %s35, 1
      %p331 = por %p329, %p330
      %p333 = scmp.ne.s32.totalorder %s318, %s332
      %p334 = scmp.eq.s32.totalorder %s35, 0
      %p335 = por %p333, %p334
      %s337 = sadd.s32 %s336, 1
      %p340 = scmp.eq.s32.totalorder %s29, 1
      %p341 = scmp.ne.s32.totalorder %s336, %s338
      %p342 = scmp.eq.s32.totalorder %s29, 0
      %p343 = por %p341, %p342
      %p344 = scmp.ne.s32.totalorder %s336, %s338
      %p345 = scmp.eq.s32.totalorder %s34, 1
      %p346 = por %p344, %p345
      %p347 = scmp.ne.s32.totalorder %s338, %s339
      %p348 = scmp.eq.s32.totalorder %s34, 0
      %p349 = por %p347, %p348
      %p350 = scmp.ne.s32.totalorder %s338, %s339
      %p351 = scmp.eq.s32.totalorder %s35, 1
      %p352 = por %p350, %p351
      %p354 = scmp.ne.s32.totalorder %s339, %s353
      %p355 = scmp.eq.s32.totalorder %s35, 0
      %p356 = por %p354, %p355
      %s358 = sadd.s32 %s357, 1
      %p361 = scmp.eq.s32.totalorder %s29, 1
      %p362 = scmp.ne.s32.totalorder %s357, %s359
      %p363 = scmp.eq.s32.totalorder %s29, 0
      %p364 = por %p362, %p363
      %p365 = scmp.ne.s32.totalorder %s357, %s359
      %p366 = scmp.eq.s32.totalorder %s34, 1
      %p367 = por %p365, %p366
      %p368 = scmp.ne.s32.totalorder %s359, %s360
      %p369 = scmp.eq.s32.totalorder %s34, 0
      %p370 = por %p368, %p369
      %p371 = scmp.ne.s32.totalorder %s359, %s360
      %p372 = scmp.eq.s32.totalorder %s35, 1
      %p373 = por %p371, %p372
      %p375 = scmp.ne.s32.totalorder %s360, %s374
      %p376 = scmp.eq.s32.totalorder %s35, 0
      %p377 = por %p375, %p376
      %s379 = sadd.s32 %s378, 1
      %p382 = scmp.eq.s32.totalorder %s29, 1
      %p383 = scmp.ne.s32.totalorder %s378, %s380
      %p384 = scmp.eq.s32.totalorder %s29, 0
      %p385 = por %p383, %p384
      %p386 = scmp.ne.s32.totalorder %s378, %s380
      %p387 = scmp.eq.s32.totalorder %s34, 1
      %p388 = por %p386, %p387
      %p389 = scmp.ne.s32.totalorder %s380, %s381
      %p390 = scmp.eq.s32.totalorder %s34, 0
      %p391 = por %p389, %p390
      %p392 = scmp.ne.s32.totalorder %s380, %s381
      %p393 = scmp.eq.s32.totalorder %s35, 1
      %p394 = por %p392, %p393
      %p396 = scmp.ne.s32.totalorder %s381, %s395
      %p397 = scmp.eq.s32.totalorder %s35, 0
      %p398 = por %p396, %p397
      %s400 = sadd.s32 %s399, 1
      %p403 = scmp.eq.s32.totalorder %s29, 1
      %p404 = scmp.ne.s32.totalorder %s399, %s401
      %p405 = scmp.eq.s32.totalorder %s29, 0
      %p406 = por %p404, %p405
      %p407 = scmp.ne.s32.totalorder %s399, %s401
      %p408 = scmp.eq.s32.totalorder %s34, 1
      %p409 = por %p407, %p408
      %p410 = scmp.ne.s32.totalorder %s401, %s402
      %p411 = scmp.eq.s32.totalorder %s34, 0
      %p412 = por %p410, %p411
      %p413 = scmp.ne.s32.totalorder %s401, %s402
      %p414 = scmp.eq.s32.totalorder %s35, 1
      %p415 = por %p413, %p414
      %p417 = scmp.ne.s32.totalorder %s402, %s416
      %p418 = scmp.eq.s32.totalorder %s35, 0
      %p419 = por %p417, %p418
      %s421 = sadd.s32 %s420, 1
      %p424 = scmp.eq.s32.totalorder %s29, 1
      %p425 = scmp.ne.s32.totalorder %s420, %s422
      %p426 = scmp.eq.s32.totalorder %s29, 0
      %p427 = por %p425, %p426
      %p428 = scmp.ne.s32.totalorder %s420, %s422
      %p429 = scmp.eq.s32.totalorder %s34, 1
      %p430 = por %p428, %p429
      %p431 = scmp.ne.s32.totalorder %s422, %s423
      %p432 = scmp.eq.s32.totalorder %s34, 0
      %p433 = por %p431, %p432
      %p434 = scmp.ne.s32.totalorder %s422, %s423
      %p435 = scmp.eq.s32.totalorder %s35, 1
      %p436 = por %p434, %p435
      %p438 = scmp.ne.s32.totalorder %s423, %s437
      %p439 = scmp.eq.s32.totalorder %s35, 0
      %p440 = por %p438, %p439
      %s442 = sadd.s32 %s441, 1
      %p445 = scmp.eq.s32.totalorder %s29, 1
      %p446 = scmp.ne.s32.totalorder %s441, %s443
      %p447 = scmp.eq.s32.totalorder %s29, 0
      %p448 = por %p446, %p447
      %p449 = scmp.ne.s32.totalorder %s441, %s443
      %p450 = scmp.eq.s32.totalorder %s34, 1
      %p451 = por %p449, %p450
      %p452 = scmp.ne.s32.totalorder %s443, %s444
      %p453 = scmp.eq.s32.totalorder %s34, 0
      %p454 = por %p452, %p453
      %p455 = scmp.ne.s32.totalorder %s443, %s444
      %p456 = scmp.eq.s32.totalorder %s35, 1
      %p457 = por %p455, %p456
      %p459 = scmp.ne.s32.totalorder %s444, %s458
      %p460 = scmp.eq.s32.totalorder %s35, 0
      %p461 = por %p459, %p460
      %s462 = ssub.s32 %s29, %s36
      %p463 = scmp.eq.s32.totalorder %s462, 0
      %s465 = sadd.s32 %s464, 1
      %s466 = scalar_select %p463, %s464, %s465
      %p469 = pneg %p463
      %p470 = scmp.eq.s32.totalorder %s29, 1
      %p471 = por %p469, %p470
      %p472 = scmp.ne.s32.totalorder %s464, %s467
      %p473 = scmp.eq.s32.totalorder %s29, 0
      %p474 = por %p472, %p473
      %p475 = scmp.ne.s32.totalorder %s464, %s467
      %p476 = scmp.eq.s32.totalorder %s34, 1
      %p477 = por %p475, %p476
      %p478 = scmp.ne.s32.totalorder %s467, %s468
      %p479 = scmp.eq.s32.totalorder %s34, 0
      %p480 = por %p478, %p479
      %p481 = scmp.ne.s32.totalorder %s467, %s468
      %p482 = scmp.eq.s32.totalorder %s35, 1
      %p483 = por %p481, %p482
      %p485 = scmp.ne.s32.totalorder %s468, %s484
      %p486 = scmp.eq.s32.totalorder %s35, 0
      %p487 = por %p485, %p486
      %p488 = scmp.le.s32.totalorder 1, %s29
      %p489 = scmp.lt.s32.totalorder %s29, 3
      %p490 = pnand %p488, %p489
      %p491 = pneg %p490
      // Predicated region
      $region9: #{vit_engine_forward.1} parent=5 // pred_check
        _
      $region10: #{vit_engine_forward.1} parent=5 // pred_check_branch
        %493 = sbr.rel (%p490) target = $region12
      $region11: #{vit_engine_forward.1} parent=5 // pred_region
        %s494 = ssub.s32 %s29, 1
        // Predicated region
        $region13: #{vit_engine_forward.1} parent=11 // pred_check
          %p495 = pneg %p76
        $region14: #{vit_engine_forward.1} parent=11 // pred_check_branch
          %497 = sbr.rel (%p495) target = $region16
        $region15: #{vit_engine_forward.1} parent=11 // pred_region
          _
        $region16: #{vit_engine_forward.1} parent=11 // pred_fallthru
          _
        // Predicated region
        $region17: #{vit_engine_forward.1} parent=11 // pred_check
          %p498 = pneg %p97
        $region18: #{vit_engine_forward.1} parent=11 // pred_check_branch
          %500 = sbr.rel (%p498) target = $region20
        $region19: #{vit_engine_forward.1} parent=11 // pred_region
          _
        $region20: #{vit_engine_forward.1} parent=11 // pred_fallthru
          _
        // Predicated region
        $region21: #{vit_engine_forward.1} parent=11 // pred_check
          %p501 = pneg %p118
        $region22: #{vit_engine_forward.1} parent=11 // pred_check_branch
          %503 = sbr.rel (%p501) target = $region24
        $region23: #{vit_engine_forward.1} parent=11 // pred_region
          _
        $region24: #{vit_engine_forward.1} parent=11 // pred_fallthru
          _
        // Predicated region
        $region25: #{vit_engine_forward.1} parent=11 // pred_check
          %p504 = pneg %p139
        $region26: #{vit_engine_forward.1} parent=11 // pred_check_branch
          %506 = sbr.rel (%p504) target = $region28
        $region27: #{vit_engine_forward.1} parent=11 // pred_region
          _
        $region28: #{vit_engine_forward.1} parent=11 // pred_fallthru
          _
        // Predicated region
        $region29: #{vit_engine_forward.1} parent=11 // pred_check
          %p507 = pneg %p160
        $region30: #{vit_engine_forward.1} parent=11 // pred_check_branch
          %509 = sbr.rel (%p507) target = $region32
        $region31: #{vit_engine_forward.1} parent=11 // pred_region
          _
        $region32: #{vit_engine_forward.1} parent=11 // pred_fallthru
          _
        // Predicated region
        $region33: #{vit_engine_forward.1} parent=11 // pred_check
          %p510 = pneg %p181
        $region34: #{vit_engine_forward.1} parent=11 // pred_check_branch
          %512 = sbr.rel (%p510) target = $region36
        $region35: #{vit_engine_forward.1} parent=11 // pred_region
          _
        $region36: #{vit_engine_forward.1} parent=11 // pred_fallthru
          _
        // Predicated region
        $region37: #{vit_engine_forward.1} parent=11 // pred_check
          %p513 = pneg %p202
        $region38: #{vit_engine_forward.1} parent=11 // pred_check_branch
          %515 = sbr.rel (%p513) target = $region40
        $region39: #{vit_engine_forward.1} parent=11 // pred_region
          _
        $region40: #{vit_engine_forward.1} parent=11 // pred_fallthru
          _
        // Predicated region
        $region41: #{vit_engine_forward.1} parent=11 // pred_check
          %p516 = pneg %p223
        $region42: #{vit_engine_forward.1} parent=11 // pred_check_branch
          %518 = sbr.rel (%p516) target = $region44
        $region43: #{vit_engine_forward.1} parent=11 // pred_region
          _
        $region44: #{vit_engine_forward.1} parent=11 // pred_fallthru
          _
        // Predicated region
        $region45: #{vit_engine_forward.1} parent=11 // pred_check
          %p519 = pneg %p244
        $region46: #{vit_engine_forward.1} parent=11 // pred_check_branch
          %521 = sbr.rel (%p519) target = $region48
        $region47: #{vit_engine_forward.1} parent=11 // pred_region
          _
        $region48: #{vit_engine_forward.1} parent=11 // pred_fallthru
          _
        // Predicated region
        $region49: #{vit_engine_forward.1} parent=11 // pred_check
          %p522 = pneg %p265
        $region50: #{vit_engine_forward.1} parent=11 // pred_check_branch
          %524 = sbr.rel (%p522) target = $region52
        $region51: #{vit_engine_forward.1} parent=11 // pred_region
          _
        $region52: #{vit_engine_forward.1} parent=11 // pred_fallthru
          _
        // Predicated region
        $region53: #{vit_engine_forward.1} parent=11 // pred_check
          %p525 = pneg %p286
        $region54: #{vit_engine_forward.1} parent=11 // pred_check_branch
          %527 = sbr.rel (%p525) target = $region56
        $region55: #{vit_engine_forward.1} parent=11 // pred_region
          _
        $region56: #{vit_engine_forward.1} parent=11 // pred_fallthru
          _
        // Predicated region
        $region57: #{vit_engine_forward.1} parent=11 // pred_check
          %p528 = pneg %p307
        $region58: #{vit_engine_forward.1} parent=11 // pred_check_branch
          %530 = sbr.rel (%p528) target = $region60
        $region59: #{vit_engine_forward.1} parent=11 // pred_region
          _
        $region60: #{vit_engine_forward.1} parent=11 // pred_fallthru
          _
        // Predicated region
        $region61: #{vit_engine_forward.1} parent=11 // pred_check
          %p531 = pneg %p328
        $region62: #{vit_engine_forward.1} parent=11 // pred_check_branch
          %533 = sbr.rel (%p531) target = $region64
        $region63: #{vit_engine_forward.1} parent=11 // pred_region
          _
        $region64: #{vit_engine_forward.1} parent=11 // pred_fallthru
          _
        // Predicated region
        $region65: #{vit_engine_forward.1} parent=11 // pred_check
          %p534 = pneg %p349
        $region66: #{vit_engine_forward.1} parent=11 // pred_check_branch
          %536 = sbr.rel (%p534) target = $region68
        $region67: #{vit_engine_forward.1} parent=11 // pred_region
          _
        $region68: #{vit_engine_forward.1} parent=11 // pred_fallthru
          _
        // Predicated region
        $region69: #{vit_engine_forward.1} parent=11 // pred_check
          %p537 = pneg %p370
        $region70: #{vit_engine_forward.1} parent=11 // pred_check_branch
          %539 = sbr.rel (%p537) target = $region72
        $region71: #{vit_engine_forward.1} parent=11 // pred_region
          _
        $region72: #{vit_engine_forward.1} parent=11 // pred_fallthru
          _
        // Predicated region
        $region73: #{vit_engine_forward.1} parent=11 // pred_check
          %p540 = pneg %p391
        $region74: #{vit_engine_forward.1} parent=11 // pred_check_branch
          %542 = sbr.rel (%p540) target = $region76
        $region75: #{vit_engine_forward.1} parent=11 // pred_region
          _
        $region76: #{vit_engine_forward.1} parent=11 // pred_fallthru
          _
        // Predicated region
        $region77: #{vit_engine_forward.1} parent=11 // pred_check
          %p543 = pneg %p412
        $region78: #{vit_engine_forward.1} parent=11 // pred_check_branch
          %545 = sbr.rel (%p543) target = $region80
        $region79: #{vit_engine_forward.1} parent=11 // pred_region
          _
        $region80: #{vit_engine_forward.1} parent=11 // pred_fallthru
          _
        // Predicated region
        $region81: #{vit_engine_forward.1} parent=11 // pred_check
          %p546 = pneg %p433
        $region82: #{vit_engine_forward.1} parent=11 // pred_check_branch
          %548 = sbr.rel (%p546) target = $region84
        $region83: #{vit_engine_forward.1} parent=11 // pred_region
          _
        $region84: #{vit_engine_forward.1} parent=11 // pred_fallthru
          _
        // Predicated region
        $region85: #{vit_engine_forward.1} parent=11 // pred_check
          %p549 = pneg %p454
        $region86: #{vit_engine_forward.1} parent=11 // pred_check_branch
          %551 = sbr.rel (%p549) target = $region88
        $region87: #{vit_engine_forward.1} parent=11 // pred_region
          _
        $region88: #{vit_engine_forward.1} parent=11 // pred_fallthru
          _
      $region12: #{vit_engine_forward.1} parent=5 // pred_fallthru
        _
      %p552 = scmp.lt.s32.totalorder %s29, 2
      // Predicated region
      $region89: #{vit_engine_forward.1} parent=5 // pred_check
        %p553 = pneg %p552
      $region90: #{vit_engine_forward.1} parent=5 // pred_check_branch
        %555 = sbr.rel (%p553) target = $region92
      $region91: #{vit_engine_forward.1} parent=5 // pred_region
        // Predicated region
        $region93: #{vit_engine_forward.1} parent=91 // pred_check
          %p556 = pneg %p49
        $region94: #{vit_engine_forward.1} parent=91 // pred_check_branch
          %558 = sbr.rel (%p556) target = $region96
        $region95: #{vit_engine_forward.1} parent=91 // pred_region
          %p559 = scmp.lt.s32.totalorder %s29, 1
          %s560 = scalar_select %p559, %s29, 1
          %s561 = smul.addr %s560, 2
          %s562 = smul.addr %s561, 8
          %s563 = scalar_lea.vmem %s0, %s562
        $region96: #{vit_engine_forward.1} parent=91 // pred_fallthru
          _
      $region92: #{vit_engine_forward.1} parent=5 // pred_fallthru
        _
      %p564 = scmp.le.s32.totalorder 1, %s29
      %p565 = scmp.lt.s32.totalorder %s29, 3
      %p566 = pnand %p564, %p565
      %p567 = pneg %p566
      // Predicated region
      $region97: #{vit_engine_forward.1} parent=5 // pred_check
        _
      $region98: #{vit_engine_forward.1} parent=5 // pred_check_branch
        %569 = sbr.rel (%p566) target = $region100
      $region99: #{vit_engine_forward.1} parent=5 // pred_region
        %s570 = ssub.s32 %s29, 1
        %p571 = scmp.lt.s32.totalorder %s34, 1
        %s572 = scalar_select %p571, %s34, 1
        %s573 = smul.addr %s572, 2
        %s574 = smul.addr %s573, 8
        %s575 = scalar_lea.vmem %s0, %s574
        %p576 = pneg %p55
        %p577 = pneg %p52
        %p578 = pneg %p76
        %p579 = pneg %p73
        %p580 = pneg %p97
        %p581 = pneg %p94
        %p582 = pneg %p118
        %p583 = pneg %p115
        %p584 = pneg %p139
        %p585 = pneg %p136
        %p586 = pneg %p160
        %p587 = pneg %p157
        %p588 = pneg %p181
        %p589 = pneg %p178
        %p590 = pneg %p202
        %p591 = pneg %p199
        %p592 = pneg %p223
        %p593 = pneg %p220
        %p594 = pneg %p244
        %p595 = pneg %p241
        %p596 = pneg %p265
        %p597 = pneg %p262
        %p598 = pneg %p286
        %p599 = pneg %p283
        %p600 = pneg %p307
        %p601 = pneg %p304
        %p602 = pneg %p328
        %p603 = pneg %p325
        %p604 = pneg %p349
        %p605 = pneg %p346
        %p606 = pneg %p370
        %p607 = pneg %p367
        %p608 = pneg %p391
        %p609 = pneg %p388
        %p610 = pneg %p412
        %p611 = pneg %p409
        %p612 = pneg %p433
        %p613 = pneg %p430
        %p614 = pneg %p454
        %p615 = pneg %p451
        %p616 = pneg %p480
        %p617 = pneg %p477
        %s618 = sand.u32 %s467, 1
        %s619 = scalar_lea.sflag [#allocation3], %s618
        %s620 = sand.u32 %s467, 1
        %s621 = smul.addr %s620, 16
        %s622 = scalar_lea.vmem [#allocation2], %s621
        %p623 = scmp.lt.s32.totalorder %s34, 1
        %s624 = scalar_select %p623, %s34, 1
        %s625 = smul.addr %s624, 2
        %s626 = smul.addr %s625, 8
        %s627 = scalar_lea.vmem %s0, %s626
        %v629 = vld [vmem:[%s627] sm:$0xff]
        %v630 = vld [vmem:[%s627 + $0x8] sm:$0xff]
        %v631 = vld [vmem:[%s2] sm:$0xff]
        %v632 = vld [vmem:[%s2 + $0x8] sm:$0xff]
        %v633 = vld [vmem:[%s2 + $0x10] sm:$0xff]
        %v634 = vld [vmem:[%s2 + $0x18] sm:$0xff]
        %v635 = vld [vmem:[%s2 + $0x20] sm:$0xff]
        %v636 = vld [vmem:[%s2 + $0x28] sm:$0xff]
        %v637 = vpack.c.bf16 %v630, %v629
        %v638 = vpack.c.bf16 %v632, %v631
        %v639 = vpack.c.bf16 %v634, %v633
        %v640 = vpack.c.bf16 %v636, %v635
        %v641 = vld [vmem:[%s3] sm:$0x1]
        %v643 = vlaneseq
        %v644 = vshrl.u32 %v643, 7
        %v645 = vsub.s32 0, %v644
        %v646 = vrot.slane %v641, %v645
        %vm648 = vcmask 392192
        %v650 = vsel %vm648, %v637, 0
        %652 = vmatprep.subr.bf16.mxu0 0
        %653 = vmatpush1.bf16.msra.mxu0 %v638
        %654 = vmatprep.subr.bf16.mxu0 0
        %655 = vmatpush1.bf16.msra.mxu0 %v639
        %656 = vmatprep.subr.bf16.mxu0 0
        %657 = vmatpush1.bf16.msra.mxu0 %v640
        %658 = vmatprep.subr.bf16.mxu0 0
        %659 = vmatpush1.bf16.msra.mxu0 0
        %660 = vmatprep.subr.bf16.mxu0 0
        %661 = vmatpush1.bf16.msra.mxu0 0
        %662 = vmatprep.subr.bf16.mxu0 0
        %663 = vmatpush1.bf16.msra.mxu0 0
        %664 = vmatprep.subr.bf16.mxu0 0
        %665 = vmatpush1.bf16.msra.mxu0 0
        %666 = vmatprep.subr.bf16.mxu0 0
        %667 = vmatpush1.bf16.msra.mxu0 0
        %668 = vmatprep.subr.bf16.mxu0 0
        %669 = vmatpush1.bf16.msra.mxu0 0
        %670 = vmatprep.subr.bf16.mxu0 0
        %671 = vmatpush1.bf16.msra.mxu0 0
        %672 = vmatprep.subr.bf16.mxu0 0
        %673 = vmatpush1.bf16.msra.mxu0 0
        %674 = vmatprep.subr.bf16.mxu0 0
        %675 = vmatpush1.bf16.msra.mxu0 0
        %676 = vmatprep.subr.bf16.mxu0 0
        %677 = vmatpush1.bf16.msra.mxu0 0
        %678 = vmatprep.subr.bf16.mxu0 0
        %679 = vmatpush1.bf16.msra.mxu0 0
        %680 = vmatprep.subr.bf16.mxu0 0
        %681 = vmatpush1.bf16.msra.mxu0 0
        %682 = vmatprep.subr.bf16.mxu0 0
        %683 = vmatpush1.bf16.msra.mxu0 0
        %684 = vmatprep.mubr.bf16.mxu0 0
        %685 = vmatmul.mubr.bf16.gmra.mrb[0].mxu0 %v650
        %v686 = vpop.f32.mrb[0].mxu0
        %v687 = vadd.f32 %v646, %v686
        %v688 = vpop.f32.mrb[0].mxu0
        %v689 = vpop.f32.mrb[0].mxu0
        %v690 = vadd.f32 %v646, %v689
        %v691 = vpop.f32.mrb[0].mxu0
        %692 = vdwg.mxu0
        %v693 = vld [vmem:[%s1] sm:$0xff]
        %v694 = vld [vmem:[%s1 + $0x8] sm:$0xff]
        %v695 = vadd.f32 %v687, %v693
        %v696 = vadd.f32 %v690, %v694
        %v697 = vld [vmem:[%s4] sm:$0x1]
        %v698 = vld [vmem:[%s5] sm:$0x1]
        %vm699 = vcmask 261120
        %v700 = vsel %vm699, %v695, 0.0
        %701 = vadd.xlane.f32.xlu0 %v700
        %v702 = vpop.xlane.xlu0 %701
        %v703 = vsel %vm699, %v696, 0.0
        %704 = vadd.xlane.f32.xlu0 %v703
        %v705 = vpop.xlane.xlu0 %704
        %v706 = vrcp.pop 32.0
        %v707 = vmul.f32 %v702, %v706
        %v708 = vmul.f32 %v705, %v706
        %v709 = vsub.f32 %v695, %v707
        %v710 = vsub.f32 %v696, %v708
        %v711 = vmul.f32 %v709, %v709
        %v712 = vmul.f32 %v710, %v710
        %v713 = vsel %vm699, %v711, 0.0
        %714 = vadd.xlane.f32.xlu0 %v713
        %v715 = vpop.xlane.xlu0 %714
        %v716 = vsel %vm699, %v712, 0.0
        %717 = vadd.xlane.f32.xlu0 %v716
        %v718 = vpop.xlane.xlu0 %717
        %v719 = vmul.f32 %v715, %v706
        %v720 = vmul.f32 %v718, %v706
        %v721 = vadd.f32 %v719, 1e-06
        %v722 = vadd.f32 %v720, 1e-06
        %v723 = vrsqrt.pop %v721
        %v724 = vrsqrt.pop %v722
        %v725 = vmul.f32 %v709, %v723
        %v726 = vmul.f32 %v710, %v724
        %v728 = vlaneseq
        %v729 = vshrl.u32 %v728, 7
        %v730 = vsub.s32 0, %v729
        %v731 = vrot.slane %v697, %v730
        %v733 = vmul.f32 %v725, %v731
        %v734 = vmul.f32 %v726, %v731
        %v736 = vlaneseq
        %v737 = vshrl.u32 %v736, 7
        %v738 = vsub.s32 0, %v737
        %v739 = vrot.slane %v698, %v738
        %v741 = vadd.f32 %v733, %v739
        %v742 = vadd.f32 %v734, %v739
        %v743 = vld [vmem:[%s6] sm:$0xff]
        %v744 = vld [vmem:[%s6 + $0x8] sm:$0xff]
        %v745 = vld [vmem:[%s6 + $0x10] sm:$0xff]
        %v746 = vld [vmem:[%s6 + $0x18] sm:$0xff]
        %v747 = vpack.c.bf16 %v742, %v741
        %v748 = vpack.c.bf16 %v744, %v743
        %v749 = vpack.c.bf16 %v746, %v745
        %v750 = vld [vmem:[%s7] sm:$0x1]
        %v752 = vlaneseq
        %v753 = vshrl.u32 %v752, 7
        %v754 = vsub.s32 0, %v753
        %v755 = vrot.slane %v750, %v754
        %v758 = vsel %vm699, %v747, 0
        %760 = vmatprep.subr.bf16.mxu0 0
        %761 = vmatpush1.bf16.msra.mxu0 %v748
        %762 = vmatprep.subr.bf16.mxu0 0
        %763 = vmatpush1.bf16.msra.mxu0 %v749
        %764 = vmatprep.subr.bf16.mxu0 0
        %765 = vmatpush1.bf16.msra.mxu0 0
        %766 = vmatprep.subr.bf16.mxu0 0
        %767 = vmatpush1.bf16.msra.mxu0 0
        %768 = vmatprep.subr.bf16.mxu0 0
        %769 = vmatpush1.bf16.msra.mxu0 0
        %770 = vmatprep.subr.bf16.mxu0 0
        %771 = vmatpush1.bf16.msra.mxu0 0
        %772 = vmatprep.subr.bf16.mxu0 0
        %773 = vmatpush1.bf16.msra.mxu0 0
        %774 = vmatprep.subr.bf16.mxu0 0
        %775 = vmatpush1.bf16.msra.mxu0 0
        %776 = vmatprep.subr.bf16.mxu0 0
        %777 = vmatpush1.bf16.msra.mxu0 0
        %778 = vmatprep.subr.bf16.mxu0 0
        %779 = vmatpush1.bf16.msra.mxu0 0
        %780 = vmatprep.subr.bf16.mxu0 0
        %781 = vmatpush1.bf16.msra.mxu0 0
        %782 = vmatprep.subr.bf16.mxu0 0
        %783 = vmatpush1.bf16.msra.mxu0 0
        %784 = vmatprep.subr.bf16.mxu0 0
        %785 = vmatpush1.bf16.msra.mxu0 0
        %786 = vmatprep.subr.bf16.mxu0 0
        %787 = vmatpush1.bf16.msra.mxu0 0
        %788 = vmatprep.subr.bf16.mxu0 0
        %789 = vmatpush1.bf16.msra.mxu0 0
        %790 = vmatprep.subr.bf16.mxu0 0
        %791 = vmatpush1.bf16.msra.mxu0 0
        %792 = vmatprep.mubr.bf16.mxu0 0
        %793 = vmatmul.mubr.bf16.gmra.mrb[0].mxu0 %v758
        %v794 = vpop.f32.mrb[0].mxu0
        %v795 = vadd.f32 %v755, %v794
        %v796 = vpop.f32.mrb[0].mxu0
        %v797 = vpop.f32.mrb[0].mxu0
        %v798 = vadd.f32 %v755, %v797
        %v799 = vpop.f32.mrb[0].mxu0
        %800 = vdwg.mxu0
        %v801 = vld [vmem:[%s8] sm:$0xff]
        %v802 = vld [vmem:[%s8 + $0x8] sm:$0xff]
        %v803 = vld [vmem:[%s8 + $0x10] sm:$0xff]
        %v804 = vld [vmem:[%s8 + $0x18] sm:$0xff]
        %v805 = vld [vmem:[%s9] sm:$0x1]
        %v806 = vpack.c.bf16 %v798, %v795
        %808 = vrot.lane.b32.xlu0 %v806, 96
        %v809 = vpop.permute.xlu0 %808
        %vm810 = vcmask 130048
        %v812 = vsel %vm810, %v806, 0
        %v815 = vsel %vm810, %v809, 0
        %817 = vmatprep.subr.bf16.mxu0 0
        %818 = vmatpush1.bf16.xpose.msra.mxu0 %v815
        %819 = vmatprep.subr.bf16.mxu0 0
        %820 = vmatpush1.bf16.xpose.msra.mxu0 0
        %821 = vmatprep.subr.bf16.mxu0 0
        %822 = vmatpush1.bf16.xpose.msra.mxu0 0
        %823 = vmatprep.subr.bf16.mxu0 0
        %824 = vmatpush1.bf16.xpose.msra.mxu0 0
        %825 = vmatprep.subr.bf16.mxu0 0
        %826 = vmatpush1.bf16.xpose.msra.mxu0 0
        %827 = vmatprep.subr.bf16.mxu0 0
        %828 = vmatpush1.bf16.xpose.msra.mxu0 0
        %829 = vmatprep.subr.bf16.mxu0 0
        %830 = vmatpush1.bf16.xpose.msra.mxu0 0
        %831 = vmatprep.subr.bf16.mxu0 0
        %832 = vmatpush1.bf16.xpose.msra.mxu0 0
        %833 = vmatprep.subr.bf16.mxu0 0
        %834 = vmatpush1.bf16.xpose.msra.mxu0 0
        %835 = vmatprep.subr.bf16.mxu0 0
        %836 = vmatpush1.bf16.xpose.msra.mxu0 0
        %837 = vmatprep.subr.bf16.mxu0 0
        %838 = vmatpush1.bf16.xpose.msra.mxu0 0
        %839 = vmatprep.subr.bf16.mxu0 0
        %840 = vmatpush1.bf16.xpose.msra.mxu0 0
        %841 = vmatprep.subr.bf16.mxu0 0
        %842 = vmatpush1.bf16.xpose.msra.mxu0 0
        %843 = vmatprep.subr.bf16.mxu0 0
        %844 = vmatpush1.bf16.xpose.msra.mxu0 0
        %845 = vmatprep.subr.bf16.mxu0 0
        %846 = vmatpush1.bf16.xpose.msra.mxu0 0
        %847 = vmatprep.subr.bf16.mxu0 0
        %848 = vmatpush1.bf16.xpose.msra.mxu0 0
        %849 = vmatprep.mubr.bf16.mxu0 0
        %850 = vmatmul.mubr.bf16.gmra.mrb[0].mxu0 %v812
        %v851 = vpop.f32.mrb[0].mxu0
        %v852 = vadd.f32 0.0, %v851
        %v853 = vpop.f32.mrb[0].mxu0
        %v854 = vpop.f32.mrb[0].mxu0
        %v855 = vadd.f32 0.0, %v854
        %v856 = vpop.f32.mrb[0].mxu0
        %857 = vdwg.mxu0
        %v858 = vmul.f32 %v852, 0.25
        %v859 = vmul.f32 %v855, 0.25
        %v860 = vsel %vm810, %v858, -inf
        %861 = vmax.xlane.f32.xlu0 %v860
        %v862 = vpop.xlane.xlu0 %861
        %v863 = vsel %vm810, %v859, -inf
        %864 = vmax.xlane.f32.xlu0 %v863
        %v865 = vpop.xlane.xlu0 %864
        %v866 = vsub.f32 %v858, %v862
        %v867 = vsub.f32 %v859, %v865
        %v868 = vmul.f32 %v866, 1.442695
        %v869 = vpow.pop %v868
        %v870 = vmul.f32 %v867, 1.442695
        %v871 = vpow.pop %v870
        %v872 = vsel %vm810, %v869, 0.0
        %873 = vadd.xlane.f32.xlu0 %v872
        %v874 = vpop.xlane.xlu0 %873
        %v875 = vsel %vm810, %v871, 0.0
        %876 = vadd.xlane.f32.xlu0 %v875
        %v877 = vpop.xlane.xlu0 %876
        %v878 = vrcp.pop %v874
        %v879 = vrcp.pop %v877
        %v880 = vmul.f32 %v869, %v878
        %v881 = vmul.f32 %v871, %v879
        %v882 = vpack.c.bf16 %v881, %v880
        %883 = vrot.lane.b32.xlu0 %v806, 64
        %v884 = vpop.permute.xlu0 %883
        %v887 = vsel %vm810, %v882, 0
        %889 = vmatprep.subr.bf16.mxu0 0
        %890 = vmatpush1.bf16.msra.mxu0 %v884
        %891 = vmatprep.subr.bf16.mxu0 0
        %892 = vmatpush1.bf16.msra.mxu0 0
        %893 = vmatprep.subr.bf16.mxu0 0
        %894 = vmatpush1.bf16.msra.mxu0 0
        %895 = vmatprep.subr.bf16.mxu0 0
        %896 = vmatpush1.bf16.msra.mxu0 0
        %897 = vmatprep.subr.bf16.mxu0 0
        %898 = vmatpush1.bf16.msra.mxu0 0
        %899 = vmatprep.subr.bf16.mxu0 0
        %900 = vmatpush1.bf16.msra.mxu0 0
        %901 = vmatprep.subr.bf16.mxu0 0
        %902 = vmatpush1.bf16.msra.mxu0 0
        %903 = vmatprep.subr.bf16.mxu0 0
        %904 = vmatpush1.bf16.msra.mxu0 0
        %905 = vmatprep.subr.bf16.mxu0 0
        %906 = vmatpush1.bf16.msra.mxu0 0
        %907 = vmatprep.subr.bf16.mxu0 0
        %908 = vmatpush1.bf16.msra.mxu0 0
        %909 = vmatprep.subr.bf16.mxu0 0
        %910 = vmatpush1.bf16.msra.mxu0 0
        %911 = vmatprep.subr.bf16.mxu0 0
        %912 = vmatpush1.bf16.msra.mxu0 0
        %913 = vmatprep.subr.bf16.mxu0 0
        %914 = vmatpush1.bf16.msra.mxu0 0
        %915 = vmatprep.subr.bf16.mxu0 0
        %916 = vmatpush1.bf16.msra.mxu0 0
        %917 = vmatprep.subr.bf16.mxu0 0
        %918 = vmatpush1.bf16.msra.mxu0 0
        %919 = vmatprep.subr.bf16.mxu0 0
        %920 = vmatpush1.bf16.msra.mxu0 0
        %921 = vmatprep.mubr.bf16.mxu0 0
        %922 = vmatmul.mubr.bf16.gmra.mrb[0].mxu0 %v887
        %v923 = vpop.f32.mrb[0].mxu0
        %v924 = vadd.f32 0.0, %v923
        %v925 = vpop.f32.mrb[0].mxu0
        %v926 = vpop.f32.mrb[0].mxu0
        %v927 = vadd.f32 0.0, %v926
        %v928 = vpop.f32.mrb[0].mxu0
        %929 = vdwg.mxu0
        %v930 = vpack.c.bf16 %v927, %v924
        %v931 = vpack.c.bf16 %v802, %v801
        %v933 = vsel %vm810, %v930, 0
        %935 = vmatprep.subr.bf16.mxu0 0
        %936 = vmatpush1.bf16.msra.mxu0 %v931
        %937 = vmatprep.subr.bf16.mxu0 0
        %938 = vmatpush1.bf16.msra.mxu0 0
        %939 = vmatprep.subr.bf16.mxu0 0
        %940 = vmatpush1.bf16.msra.mxu0 0
        %941 = vmatprep.subr.bf16.mxu0 0
        %942 = vmatpush1.bf16.msra.mxu0 0
        %943 = vmatprep.subr.bf16.mxu0 0
        %944 = vmatpush1.bf16.msra.mxu0 0
        %945 = vmatprep.subr.bf16.mxu0 0
        %946 = vmatpush1.bf16.msra.mxu0 0
        %947 = vmatprep.subr.bf16.mxu0 0
        %948 = vmatpush1.bf16.msra.mxu0 0
        %949 = vmatprep.subr.bf16.mxu0 0
        %950 = vmatpush1.bf16.msra.mxu0 0
        %951 = vmatprep.subr.bf16.mxu0 0
        %952 = vmatpush1.bf16.msra.mxu0 0
        %953 = vmatprep.subr.bf16.mxu0 0
        %954 = vmatpush1.bf16.msra.mxu0 0
        %955 = vmatprep.subr.bf16.mxu0 0
        %956 = vmatpush1.bf16.msra.mxu0 0
        %957 = vmatprep.subr.bf16.mxu0 0
        %958 = vmatpush1.bf16.msra.mxu0 0
        %959 = vmatprep.subr.bf16.mxu0 0
        %960 = vmatpush1.bf16.msra.mxu0 0
        %961 = vmatprep.subr.bf16.mxu0 0
        %962 = vmatpush1.bf16.msra.mxu0 0
        %963 = vmatprep.subr.bf16.mxu0 0
        %964 = vmatpush1.bf16.msra.mxu0 0
        %965 = vmatprep.subr.bf16.mxu0 0
        %966 = vmatpush1.bf16.msra.mxu0 0
        %967 = vmatprep.mubr.bf16.mxu0 0
        %968 = vmatmul.mubr.bf16.gmra.mrb[0].mxu0 %v933
        %v969 = vpop.f32.mrb[0].mxu0
        %v970 = vadd.f32 0.0, %v969
        %v971 = vpop.f32.mrb[0].mxu0
        %v972 = vpop.f32.mrb[0].mxu0
        %v973 = vadd.f32 0.0, %v972
        %v974 = vpop.f32.mrb[0].mxu0
        %975 = vdwg.mxu0
        %v977 = vlaneseq
        %v978 = vshrl.u32 %v977, 7
        %v979 = vsub.s32 0, %v978
        %v980 = vrot.slane %v805, %v979
        %v982 = vadd.f32 %v980, %v970
        %v983 = vadd.f32 %v980, %v973
        %984 = vrot.lane.b32.xlu0 %v806, 112
        %v985 = vpop.permute.xlu0 %984
        %986 = vrot.lane.b32.xlu0 %v806, 80
        %v987 = vpop.permute.xlu0 %986
        %v989 = vsel %vm810, %v985, 0
        %v992 = vsel %vm810, %v987, 0
        %994 = vmatprep.subr.bf16.mxu0 0
        %995 = vmatpush1.bf16.xpose.msra.mxu0 %v992
        %996 = vmatprep.subr.bf16.mxu0 0
        %997 = vmatpush1.bf16.xpose.msra.mxu0 0
        %998 = vmatprep.subr.bf16.mxu0 0
        %999 = vmatpush1.bf16.xpose.msra.mxu0 0
        %1000 = vmatprep.subr.bf16.mxu0 0
        %1001 = vmatpush1.bf16.xpose.msra.mxu0 0
        %1002 = vmatprep.subr.bf16.mxu0 0
        %1003 = vmatpush1.bf16.xpose.msra.mxu0 0
        %1004 = vmatprep.subr.bf16.mxu0 0
        %1005 = vmatpush1.bf16.xpose.msra.mxu0 0
        %1006 = vmatprep.subr.bf16.mxu0 0
        %1007 = vmatpush1.bf16.xpose.msra.mxu0 0
        %1008 = vmatprep.subr.bf16.mxu0 0
        %1009 = vmatpush1.bf16.xpose.msra.mxu0 0
        %1010 = vmatprep.subr.bf16.mxu0 0
        %1011 = vmatpush1.bf16.xpose.msra.mxu0 0
        %1012 = vmatprep.subr.bf16.mxu0 0
        %1013 = vmatpush1.bf16.xpose.msra.mxu0 0
        %1014 = vmatprep.subr.bf16.mxu0 0
        %1015 = vmatpush1.bf16.xpose.msra.mxu0 0
        %1016 = vmatprep.subr.bf16.mxu0 0
        %1017 = vmatpush1.bf16.xpose.msra.mxu0 0
        %1018 = vmatprep.subr.bf16.mxu0 0
        %1019 = vmatpush1.bf16.xpose.msra.mxu0 0
        %1020 = vmatprep.subr.bf16.mxu0 0
        %1021 = vmatpush1.bf16.xpose.msra.mxu0 0
        %1022 = vmatprep.subr.bf16.mxu0 0
        %1023 = vmatpush1.bf16.xpose.msra.mxu0 0
        %1024 = vmatprep.subr.bf16.mxu0 0
        %1025 = vmatpush1.bf16.xpose.msra.mxu0 0
        %1026 = vmatprep.mubr.bf16.mxu0 0
        %1027 = vmatmul.mubr.bf16.gmra.mrb[0].mxu0 %v989
        %v1028 = vpop.f32.mrb[0].mxu0
        %v1029 = vadd.f32 0.0, %v1028
        %v1030 = vpop.f32.mrb[0].mxu0
        %v1031 = vpop.f32.mrb[0].mxu0
        %v1032 = vadd.f32 0.0, %v1031
        %v1033 = vpop.f32.mrb[0].mxu0
        %1034 = vdwg.mxu0
        %v1035 = vmul.f32 %v1029, 0.25
        %v1036 = vmul.f32 %v1032, 0.25
        %v1037 = vsel %vm810, %v1035, -inf
        %1038 = vmax.xlane.f32.xlu0 %v1037
        %v1039 = vpop.xlane.xlu0 %1038
        %v1040 = vsel %vm810, %v1036, -inf
        %1041 = vmax.xlane.f32.xlu0 %v1040
        %v1042 = vpop.xlane.xlu0 %1041
        %v1043 = vsub.f32 %v1035, %v1039
        %v1044 = vsub.f32 %v1036, %v1042
        %v1045 = vmul.f32 %v1043, 1.442695
        %v1046 = vpow.pop %v1045
        %v1047 = vmul.f32 %v1044, 1.442695
        %v1048 = vpow.pop %v1047
        %v1049 = vsel %vm810, %v1046, 0.0
        %1050 = vadd.xlane.f32.xlu0 %v1049
        %v1051 = vpop.xlane.xlu0 %1050
        %v1052 = vsel %vm810, %v1048, 0.0
        %1053 = vadd.xlane.f32.xlu0 %v1052
        %v1054 = vpop.xlane.xlu0 %1053
        %v1055 = vrcp.pop %v1051
        %v1056 = vrcp.pop %v1054
        %v1057 = vmul.f32 %v1046, %v1055
        %v1058 = vmul.f32 %v1048, %v1056
        %v1059 = vpack.c.bf16 %v1058, %v1057
        %1060 = vrot.lane.b32.xlu0 %v806, 48
        %v1061 = vpop.permute.xlu0 %1060
        %v1064 = vsel %vm810, %v1059, 0
        %1066 = vmatprep.subr.bf16.mxu0 0
        %1067 = vmatpush1.bf16.msra.mxu0 %v1061
        %1068 = vmatprep.subr.bf16.mxu0 0
        %1069 = vmatpush1.bf16.msra.mxu0 0
        %1070 = vmatprep.subr.bf16.mxu0 0
        %1071 = vmatpush1.bf16.msra.mxu0 0
        %1072 = vmatprep.subr.bf16.mxu0 0
        %1073 = vmatpush1.bf16.msra.mxu0 0
        %1074 = vmatprep.subr.bf16.mxu0 0
        %1075 = vmatpush1.bf16.msra.mxu0 0
        %1076 = vmatprep.subr.bf16.mxu0 0
        %1077 = vmatpush1.bf16.msra.mxu0 0
        %1078 = vmatprep.subr.bf16.mxu0 0
        %1079 = vmatpush1.bf16.msra.mxu0 0
        %1080 = vmatprep.subr.bf16.mxu0 0
        %1081 = vmatpush1.bf16.msra.mxu0 0
        %1082 = vmatprep.subr.bf16.mxu0 0
        %1083 = vmatpush1.bf16.msra.mxu0 0
        %1084 = vmatprep.subr.bf16.mxu0 0
        %1085 = vmatpush1.bf16.msra.mxu0 0
        %1086 = vmatprep.subr.bf16.mxu0 0
        %1087 = vmatpush1.bf16.msra.mxu0 0
        %1088 = vmatprep.subr.bf16.mxu0 0
        %1089 = vmatpush1.bf16.msra.mxu0 0
        %1090 = vmatprep.subr.bf16.mxu0 0
        %1091 = vmatpush1.bf16.msra.mxu0 0
        %1092 = vmatprep.subr.bf16.mxu0 0
        %1093 = vmatpush1.bf16.msra.mxu0 0
        %1094 = vmatprep.subr.bf16.mxu0 0
        %1095 = vmatpush1.bf16.msra.mxu0 0
        %1096 = vmatprep.subr.bf16.mxu0 0
        %1097 = vmatpush1.bf16.msra.mxu0 0
        %1098 = vmatprep.mubr.bf16.mxu0 0
        %1099 = vmatmul.mubr.bf16.gmra.mrb[0].mxu0 %v1064
        %v1100 = vpop.f32.mrb[0].mxu0
        %v1101 = vadd.f32 0.0, %v1100
        %v1102 = vpop.f32.mrb[0].mxu0
        %v1103 = vpop.f32.mrb[0].mxu0
        %v1104 = vadd.f32 0.0, %v1103
        %v1105 = vpop.f32.mrb[0].mxu0
        %1106 = vdwg.mxu0
        %v1107 = vpack.c.bf16 %v1104, %v1101
        %v1108 = vpack.c.bf16 %v804, %v803
        %v1110 = vsel %vm810, %v1107, 0
        %1112 = vmatprep.subr.bf16.mxu0 0
        %1113 = vmatpush1.bf16.msra.mxu0 %v1108
        %1114 = vmatprep.subr.bf16.mxu0 0
        %1115 = vmatpush1.bf16.msra.mxu0 0
        %1116 = vmatprep.subr.bf16.mxu0 0
        %1117 = vmatpush1.bf16.msra.mxu0 0
        %1118 = vmatprep.subr.bf16.mxu0 0
        %1119 = vmatpush1.bf16.msra.mxu0 0
        %1120 = vmatprep.subr.bf16.mxu0 0
        %1121 = vmatpush1.bf16.msra.mxu0 0
        %1122 = vmatprep.subr.bf16.mxu0 0
        %1123 = vmatpush1.bf16.msra.mxu0 0
        %1124 = vmatprep.subr.bf16.mxu0 0
        %1125 = vmatpush1.bf16.msra.mxu0 0
        %1126 = vmatprep.subr.bf16.mxu0 0
        %1127 = vmatpush1.bf16.msra.mxu0 0
        %1128 = vmatprep.subr.bf16.mxu0 0
        %1129 = vmatpush1.bf16.msra.mxu0 0
        %1130 = vmatprep.subr.bf16.mxu0 0
        %1131 = vmatpush1.bf16.msra.mxu0 0
        %1132 = vmatprep.subr.bf16.mxu0 0
        %1133 = vmatpush1.bf16.msra.mxu0 0
        %1134 = vmatprep.subr.bf16.mxu0 0
        %1135 = vmatpush1.bf16.msra.mxu0 0
        %1136 = vmatprep.subr.bf16.mxu0 0
        %1137 = vmatpush1.bf16.msra.mxu0 0
        %1138 = vmatprep.subr.bf16.mxu0 0
        %1139 = vmatpush1.bf16.msra.mxu0 0
        %1140 = vmatprep.subr.bf16.mxu0 0
        %1141 = vmatpush1.bf16.msra.mxu0 0
        %1142 = vmatprep.subr.bf16.mxu0 0
        %1143 = vmatpush1.bf16.msra.mxu0 0
        %1144 = vmatprep.mubr.bf16.mxu0 0
        %1145 = vmatmul.mubr.bf16.gmra.mrb[0].mxu0 %v1110
        %v1146 = vpop.f32.mrb[0].mxu0
        %v1147 = vadd.f32 0.0, %v1146
        %v1148 = vpop.f32.mrb[0].mxu0
        %v1149 = vpop.f32.mrb[0].mxu0
        %v1150 = vadd.f32 0.0, %v1149
        %v1151 = vpop.f32.mrb[0].mxu0
        %1152 = vdwg.mxu0
        %v1153 = vadd.f32 %v982, %v1147
        %v1154 = vadd.f32 %v983, %v1150
        %v1155 = vadd.f32 %v695, %v1153
        %v1156 = vadd.f32 %v696, %v1154
        %v1157 = vld [vmem:[%s10] sm:$0x1]
        %v1158 = vld [vmem:[%s11] sm:$0x1]
        %v1159 = vsel %vm699, %v1155, 0.0
        %1160 = vadd.xlane.f32.xlu0 %v1159
        %v1161 = vpop.xlane.xlu0 %1160
        %v1162 = vsel %vm699, %v1156, 0.0
        %1163 = vadd.xlane.f32.xlu0 %v1162
        %v1164 = vpop.xlane.xlu0 %1163
        %v1165 = vmul.f32 %v1161, %v706
        %v1166 = vmul.f32 %v1164, %v706
        %v1167 = vsub.f32 %v1155, %v1165
        %v1168 = vsub.f32 %v1156, %v1166
        %v1169 = vmul.f32 %v1167, %v1167
        %v1170 = vmul.f32 %v1168, %v1168
        %v1171 = vsel %vm699, %v1169, 0.0
        %1172 = vadd.xlane.f32.xlu0 %v1171
        %v1173 = vpop.xlane.xlu0 %1172
        %v1174 = vsel %vm699, %v1170, 0.0
        %1175 = vadd.xlane.f32.xlu0 %v1174
        %v1176 = vpop.xlane.xlu0 %1175
        %v1177 = vmul.f32 %v1173, %v706
        %v1178 = vmul.f32 %v1176, %v706
        %v1179 = vadd.f32 %v1177, 1e-06
        %v1180 = vadd.f32 %v1178, 1e-06
        %v1181 = vrsqrt.pop %v1179
        %v1182 = vrsqrt.pop %v1180
        %v1183 = vmul.f32 %v1167, %v1181
        %v1184 = vmul.f32 %v1168, %v1182
        %v1186 = vlaneseq
        %v1187 = vshrl.u32 %v1186, 7
        %v1188 = vsub.s32 0, %v1187
        %v1189 = vrot.slane %v1157, %v1188
        %v1191 = vmul.f32 %v1183, %v1189
        %v1192 = vmul.f32 %v1184, %v1189
        %v1194 = vlaneseq
        %v1195 = vshrl.u32 %v1194, 7
        %v1196 = vsub.s32 0, %v1195
        %v1197 = vrot.slane %v1158, %v1196
        %v1199 = vadd.f32 %v1191, %v1197
        %v1200 = vadd.f32 %v1192, %v1197
        %v1201 = vld [vmem:[%s12] sm:$0xff]
        %v1202 = vld [vmem:[%s12 + $0x8] sm:$0xff]
        %v1203 = vld [vmem:[%s12 + $0x10] sm:$0xff]
        %v1204 = vld [vmem:[%s12 + $0x18] sm:$0xff]
        %v1205 = vpack.c.bf16 %v1200, %v1199
        %v1206 = vpack.c.bf16 %v1202, %v1201
        %v1207 = vpack.c.bf16 %v1204, %v1203
        %v1208 = vld [vmem:[%s13] sm:$0x1]
        %v1210 = vlaneseq
        %v1211 = vshrl.u32 %v1210, 7
        %v1212 = vsub.s32 0, %v1211
        %v1213 = vrot.slane %v1208, %v1212
        %v1216 = vsel %vm699, %v1205, 0
        %1218 = vmatprep.subr.bf16.mxu0 0
        %1219 = vmatpush1.bf16.msra.mxu0 %v1206
        %1220 = vmatprep.subr.bf16.mxu0 0
        %1221 = vmatpush1.bf16.msra.mxu0 %v1207
        %1222 = vmatprep.subr.bf16.mxu0 0
        %1223 = vmatpush1.bf16.msra.mxu0 0
        %1224 = vmatprep.subr.bf16.mxu0 0
        %1225 = vmatpush1.bf16.msra.mxu0 0
        %1226 = vmatprep.subr.bf16.mxu0 0
        %1227 = vmatpush1.bf16.msra.mxu0 0
        %1228 = vmatprep.subr.bf16.mxu0 0
        %1229 = vmatpush1.bf16.msra.mxu0 0
        %1230 = vmatprep.subr.bf16.mxu0 0
        %1231 = vmatpush1.bf16.msra.mxu0 0
        %1232 = vmatprep.subr.bf16.mxu0 0
        %1233 = vmatpush1.bf16.msra.mxu0 0
        %1234 = vmatprep.subr.bf16.mxu0 0
        %1235 = vmatpush1.bf16.msra.mxu0 0
        %1236 = vmatprep.subr.bf16.mxu0 0
        %1237 = vmatpush1.bf16.msra.mxu0 0
        %1238 = vmatprep.subr.bf16.mxu0 0
        %1239 = vmatpush1.bf16.msra.mxu0 0
        %1240 = vmatprep.subr.bf16.mxu0 0
        %1241 = vmatpush1.bf16.msra.mxu0 0
        %1242 = vmatprep.subr.bf16.mxu0 0
        %1243 = vmatpush1.bf16.msra.mxu0 0
        %1244 = vmatprep.subr.bf16.mxu0 0
        %1245 = vmatpush1.bf16.msra.mxu0 0
        %1246 = vmatprep.subr.bf16.mxu0 0
        %1247 = vmatpush1.bf16.msra.mxu0 0
        %1248 = vmatprep.subr.bf16.mxu0 0
        %1249 = vmatpush1.bf16.msra.mxu0 0
        %1250 = vmatprep.mubr.bf16.mxu0 0
        %1251 = vmatmul.mubr.bf16.gmra.mrb[0].mxu0 %v1216
        %v1252 = vpop.f32.mrb[0].mxu0
        %v1253 = vadd.f32 %v1213, %v1252
        %v1254 = vpop.f32.mrb[0].mxu0
        %v1255 = vpop.f32.mrb[0].mxu0
        %v1256 = vadd.f32 %v1213, %v1255
        %v1257 = vpop.f32.mrb[0].mxu0
        %1258 = vdwg.mxu0
        %v1259 = vmul.f32 %v1253, %v1253
        %v1260 = vmul.f32 %v1256, %v1256
        %v1261 = vmul.f32 %v1253, %v1259
        %v1262 = vmul.f32 %v1256, %v1260
        %v1263 = vmul.f32 %v1261, 0.044715
        %v1264 = vmul.f32 %v1262, 0.044715
        %v1265 = vadd.f32 %v1253, %v1263
        %v1266 = vadd.f32 %v1256, %v1264
        %v1267 = vmul.f32 %v1265, 0.7978846
        %v1268 = vmul.f32 %v1266, 0.7978846
        %v1269 = vtanh.pop %v1267
        %v1270 = vtanh.pop %v1268
        %v1271 = vadd.f32 %v1269, 1.0
        %v1272 = vadd.f32 %v1270, 1.0
        %v1273 = vmul.f32 %v1271, 0.5
        %v1274 = vmul.f32 %v1272, 0.5
        %v1275 = vmul.f32 %v1253, %v1273
        %v1276 = vmul.f32 %v1256, %v1274
        %v1277 = vld [vmem:[%s14] sm:$0xff]
        %v1278 = vld [vmem:[%s14 + $0x8] sm:$0xff]
        %v1279 = vld [vmem:[%s14 + $0x10] sm:$0xff]
        %v1280 = vld [vmem:[%s14 + $0x18] sm:$0xff]
        %v1281 = vld [vmem:[%s14 + $0x20] sm:$0xff]
        %v1282 = vld [vmem:[%s14 + $0x28] sm:$0xff]
        %v1283 = vld [vmem:[%s14 + $0x30] sm:$0xff]
        %v1284 = vld [vmem:[%s14 + $0x38] sm:$0xff]
        %v1285 = vpack.c.bf16 %v1276, %v1275
        %v1286 = vpack.c.bf16 %v1278, %v1277
        %v1287 = vpack.c.bf16 %v1280, %v1279
        %v1288 = vpack.c.bf16 %v1282, %v1281
        %v1289 = vpack.c.bf16 %v1284, %v1283
        %vm1290 = vcmask 523264
        %v1292 = vsel %vm1290, %v1285, 0
        %1294 = vmatprep.subr.bf16.mxu0 0
        %1295 = vmatpush1.bf16.msra.mxu0 %v1286
        %1296 = vmatprep.subr.bf16.mxu0 0
        %1297 = vmatpush1.bf16.msra.mxu0 %v1287
        %1298 = vmatprep.subr.bf16.mxu0 0
        %1299 = vmatpush1.bf16.msra.mxu0 %v1288
        %1300 = vmatprep.subr.bf16.mxu0 0
        %1301 = vmatpush1.bf16.msra.mxu0 %v1289
        %1302 = vmatprep.subr.bf16.mxu0 0
        %1303 = vmatpush1.bf16.msra.mxu0 0
        %1304 = vmatprep.subr.bf16.mxu0 0
        %1305 = vmatpush1.bf16.msra.mxu0 0
        %1306 = vmatprep.subr.bf16.mxu0 0
        %1307 = vmatpush1.bf16.msra.mxu0 0
        %1308 = vmatprep.subr.bf16.mxu0 0
        %1309 = vmatpush1.bf16.msra.mxu0 0
        %1310 = vmatprep.subr.bf16.mxu0 0
        %1311 = vmatpush1.bf16.msra.mxu0 0
        %1312 = vmatprep.subr.bf16.mxu0 0
        %1313 = vmatpush1.bf16.msra.mxu0 0
        %1314 = vmatprep.subr.bf16.mxu0 0
        %1315 = vmatpush1.bf16.msra.mxu0 0
        %1316 = vmatprep.subr.bf16.mxu0 0
        %1317 = vmatpush1.bf16.msra.mxu0 0
        %1318 = vmatprep.subr.bf16.mxu0 0
        %1319 = vmatpush1.bf16.msra.mxu0 0
        %1320 = vmatprep.subr.bf16.mxu0 0
        %1321 = vmatpush1.bf16.msra.mxu0 0
        %1322 = vmatprep.subr.bf16.mxu0 0
        %1323 = vmatpush1.bf16.msra.mxu0 0
        %1324 = vmatprep.subr.bf16.mxu0 0
        %1325 = vmatpush1.bf16.msra.mxu0 0
        %1326 = vmatprep.mubr.bf16.mxu0 0
        %1327 = vmatmul.mubr.bf16.gmra.mrb[0].mxu0 %v1292
        %v1328 = vpop.f32.mrb[0].mxu0
        %v1329 = vadd.f32 0.0, %v1328
        %v1330 = vpop.f32.mrb[0].mxu0
        %v1331 = vpop.f32.mrb[0].mxu0
        %v1332 = vadd.f32 0.0, %v1331
        %v1333 = vpop.f32.mrb[0].mxu0
        %1334 = vdwg.mxu0
        %v1335 = vadd.f32 %v1155, %v1329
        %v1336 = vadd.f32 %v1156, %v1332
        %v1337 = vld [vmem:[%s15] sm:$0x1]
        %v1339 = vlaneseq
        %v1340 = vshrl.u32 %v1339, 7
        %v1341 = vsub.s32 0, %v1340
        %v1342 = vrot.slane %v1337, %v1341
        %v1344 = vadd.f32 %v1335, %v1342
        %v1345 = vadd.f32 %v1336, %v1342
        %s1346 = scalar_lea.vmem %s4, 1
        %v1347 = vld [vmem:[%s1346] sm:$0x1]
        %s1348 = scalar_lea.vmem %s5, 1
        %v1349 = vld [vmem:[%s1348] sm:$0x1]
        %v1350 = vsel %vm699, %v1344, 0.0
        %1351 = vadd.xlane.f32.xlu0 %v1350
        %v1352 = vpop.xlane.xlu0 %1351
        %v1353 = vsel %vm699, %v1345, 0.0
        %1354 = vadd.xlane.f32.xlu0 %v1353
        %v1355 = vpop.xlane.xlu0 %1354
        %v1356 = vmul.f32 %v1352, %v706
        %v1357 = vmul.f32 %v1355, %v706
        %v1358 = vsub.f32 %v1344, %v1356
        %v1359 = vsub.f32 %v1345, %v1357
        %v1360 = vmul.f32 %v1358, %v1358
        %v1361 = vmul.f32 %v1359, %v1359
        %v1362 = vsel %vm699, %v1360, 0.0
        %1363 = vadd.xlane.f32.xlu0 %v1362
        %v1364 = vpop.xlane.xlu0 %1363
        %v1365 = vsel %vm699, %v1361, 0.0
        %1366 = vadd.xlane.f32.xlu0 %v1365
        %v1367 = vpop.xlane.xlu0 %1366
        %v1368 = vmul.f32 %v1364, %v706
        %v1369 = vmul.f32 %v1367, %v706
        %v1370 = vadd.f32 %v1368, 1e-06
        %v1371 = vadd.f32 %v1369, 1e-06
        %v1372 = vrsqrt.pop %v1370
        %v1373 = vrsqrt.pop %v1371
        %v1374 = vmul.f32 %v1358, %v1372
        %v1375 = vmul.f32 %v1359, %v1373
        %v1377 = vlaneseq
        %v1378 = vshrl.u32 %v1377, 7
        %v1379 = vsub.s32 0, %v1378
        %v1380 = vrot.slane %v1347, %v1379
        %v1382 = vmul.f32 %v1374, %v1380
        %v1383 = vmul.f32 %v1375, %v1380
        %v1385 = vlaneseq
        %v1386 = vshrl.u32 %v1385, 7
        %v1387 = vsub.s32 0, %v1386
        %v1388 = vrot.slane %v1349, %v1387
        %v1390 = vadd.f32 %v1382, %v1388
        %v1391 = vadd.f32 %v1383, %v1388
        %s1392 = scalar_lea.vmem %s6, 32
        %v1393 = vld [vmem:[%s1392] sm:$0xff]
        %v1394 = vld [vmem:[%s1392 + $0x8] sm:$0xff]
        %v1395 = vld [vmem:[%s1392 + $0x10] sm:$0xff]
        %v1396 = vld [vmem:[%s1392 + $0x18] sm:$0xff]
        %v1397 = vpack.c.bf16 %v1391, %v1390
        %v1398 = vpack.c.bf16 %v1394, %v1393
        %v1399 = vpack.c.bf16 %v1396, %v1395
        %s1400 = scalar_lea.vmem %s7, 1
        %v1401 = vld [vmem:[%s1400] sm:$0x1]
        %v1403 = vlaneseq
        %v1404 = vshrl.u32 %v1403, 7
        %v1405 = vsub.s32 0, %v1404
        %v1406 = vrot.slane %v1401, %v1405
        %v1409 = vsel %vm699, %v1397, 0
        %1411 = vmatprep.subr.bf16.mxu0 0
        %1412 = vmatpush1.bf16.msra.mxu0 %v1398
        %1413 = vmatprep.subr.bf16.mxu0 0
        %1414 = vmatpush1.bf16.msra.mxu0 %v1399
        %1415 = vmatprep.subr.bf16.mxu0 0
        %1416 = vmatpush1.bf16.msra.mxu0 0
        %1417 = vmatprep.subr.bf16.mxu0 0
        %1418 = vmatpush1.bf16.msra.mxu0 0
        %1419 = vmatprep.subr.bf16.mxu0 0
        %1420 = vmatpush1.bf16.msra.mxu0 0
        %1421 = vmatprep.subr.bf16.mxu0 0
        %1422 = vmatpush1.bf16.msra.mxu0 0
        %1423 = vmatprep.subr.bf16.mxu0 0
        %1424 = vmatpush1.bf16.msra.mxu0 0
        %1425 = vmatprep.subr.bf16.mxu0 0
        %1426 = vmatpush1.bf16.msra.mxu0 0
        %1427 = vmatprep.subr.bf16.mxu0 0
        %1428 = vmatpush1.bf16.msra.mxu0 0
        %1429 = vmatprep.subr.bf16.mxu0 0
        %1430 = vmatpush1.bf16.msra.mxu0 0
        %1431 = vmatprep.subr.bf16.mxu0 0
        %1432 = vmatpush1.bf16.msra.mxu0 0
        %1433 = vmatprep.subr.bf16.mxu0 0
        %1434 = vmatpush1.bf16.msra.mxu0 0
        %1435 = vmatprep.subr.bf16.mxu0 0
        %1436 = vmatpush1.bf16.msra.mxu0 0
        %1437 = vmatprep.subr.bf16.mxu0 0
        %1438 = vmatpush1.bf16.msra.mxu0 0
        %1439 = vmatprep.subr.bf16.mxu0 0
        %1440 = vmatpush1.bf16.msra.mxu0 0
        %1441 = vmatprep.subr.bf16.mxu0 0
        %1442 = vmatpush1.bf16.msra.mxu0 0
        %1443 = vmatprep.mubr.bf16.mxu0 0
        %1444 = vmatmul.mubr.bf16.gmra.mrb[0].mxu0 %v1409
        %v1445 = vpop.f32.mrb[0].mxu0
        %v1446 = vadd.f32 %v1406, %v1445
        %v1447 = vpop.f32.mrb[0].mxu0
        %v1448 = vpop.f32.mrb[0].mxu0
        %v1449 = vadd.f32 %v1406, %v1448
        %v1450 = vpop.f32.mrb[0].mxu0
        %1451 = vdwg.mxu0
        %s1452 = scalar_lea.vmem %s8, 32
        %v1453 = vld [vmem:[%s1452] sm:$0xff]
        %v1454 = vld [vmem:[%s1452 + $0x8] sm:$0xff]
        %v1455 = vld [vmem:[%s1452 + $0x10] sm:$0xff]
        %v1456 = vld [vmem:[%s1452 + $0x18] sm:$0xff]
        %s1457 = scalar_lea.vmem %s9, 1
        %v1458 = vld [vmem:[%s1457] sm:$0x1]
        %v1459 = vpack.c.bf16 %v1449, %v1446
        %1461 = vrot.lane.b32.xlu0 %v1459, 96
        %v1462 = vpop.permute.xlu0 %1461
        %v1464 = vsel %vm810, %v1459, 0
        %v1467 = vsel %vm810, %v1462, 0
        %1469 = vmatprep.subr.bf16.mxu0 0
        %1470 = vmatpush1.bf16.xpose.msra.mxu0 %v1467
        %1471 = vmatprep.subr.bf16.mxu0 0
        %1472 = vmatpush1.bf16.xpose.msra.mxu0 0
        %1473 = vmatprep.subr.bf16.mxu0 0
        %1474 = vmatpush1.bf16.xpose.msra.mxu0 0
        %1475 = vmatprep.subr.bf16.mxu0 0
        %1476 = vmatpush1.bf16.xpose.msra.mxu0 0
        %1477 = vmatprep.subr.bf16.mxu0 0
        %1478 = vmatpush1.bf16.xpose.msra.mxu0 0
        %1479 = vmatprep.subr.bf16.mxu0 0
        %1480 = vmatpush1.bf16.xpose.msra.mxu0 0
        %1481 = vmatprep.subr.bf16.mxu0 0
        %1482 = vmatpush1.bf16.xpose.msra.mxu0 0
        %1483 = vmatprep.subr.bf16.mxu0 0
        %1484 = vmatpush1.bf16.xpose.msra.mxu0 0
        %1485 = vmatprep.subr.bf16.mxu0 0
        %1486 = vmatpush1.bf16.xpose.msra.mxu0 0
        %1487 = vmatprep.subr.bf16.mxu0 0
        %1488 = vmatpush1.bf16.xpose.msra.mxu0 0
        %1489 = vmatprep.subr.bf16.mxu0 0
        %1490 = vmatpush1.bf16.xpose.msra.mxu0 0
        %1491 = vmatprep.subr.bf16.mxu0 0
        %1492 = vmatpush1.bf16.xpose.msra.mxu0 0
        %1493 = vmatprep.subr.bf16.mxu0 0
        %1494 = vmatpush1.bf16.xpose.msra.mxu0 0
        %1495 = vmatprep.subr.bf16.mxu0 0
        %1496 = vmatpush1.bf16.xpose.msra.mxu0 0
        %1497 = vmatprep.subr.bf16.mxu0 0
        %1498 = vmatpush1.bf16.xpose.msra.mxu0 0
        %1499 = vmatprep.subr.bf16.mxu0 0
        %1500 = vmatpush1.bf16.xpose.msra.mxu0 0
        %1501 = vmatprep.mubr.bf16.mxu0 0
        %1502 = vmatmul.mubr.bf16.gmra.mrb[0].mxu0 %v1464
        %v1503 = vpop.f32.mrb[0].mxu0
        %v1504 = vadd.f32 0.0, %v1503
        %v1505 = vpop.f32.mrb[0].mxu0
        %v1506 = vpop.f32.mrb[0].mxu0
        %v1507 = vadd.f32 0.0, %v1506
        %v1508 = vpop.f32.mrb[0].mxu0
        %1509 = vdwg.mxu0
        %v1510 = vmul.f32 %v1504, 0.25
        %v1511 = vmul.f32 %v1507, 0.25
        %v1512 = vsel %vm810, %v1510, -inf
        %1513 = vmax.xlane.f32.xlu0 %v1512
        %v1514 = vpop.xlane.xlu0 %1513
        %v1515 = vsel %vm810, %v1511, -inf
        %1516 = vmax.xlane.f32.xlu0 %v1515
        %v1517 = vpop.xlane.xlu0 %1516
        %v1518 = vsub.f32 %v1510, %v1514
        %v1519 = vsub.f32 %v1511, %v1517
        %v1520 = vmul.f32 %v1518, 1.442695
        %v1521 = vpow.pop %v1520
        %v1522 = vmul.f32 %v1519, 1.442695
        %v1523 = vpow.pop %v1522
        %v1524 = vsel %vm810, %v1521, 0.0
        %1525 = vadd.xlane.f32.xlu0 %v1524
        %v1526 = vpop.xlane.xlu0 %1525
        %v1527 = vsel %vm810, %v1523, 0.0
        %1528 = vadd.xlane.f32.xlu0 %v1527
        %v1529 = vpop.xlane.xlu0 %1528
        %v1530 = vrcp.pop %v1526
        %v1531 = vrcp.pop %v1529
        %v1532 = vmul.f32 %v1521, %v1530
        %v1533 = vmul.f32 %v1523, %v1531
        %v1534 = vpack.c.bf16 %v1533, %v1532
        %1535 = vrot.lane.b32.xlu0 %v1459, 64
        %v1536 = vpop.permute.xlu0 %1535
        %v1539 = vsel %vm810, %v1534, 0
        %1541 = vmatprep.subr.bf16.mxu0 0
        %1542 = vmatpush1.bf16.msra.mxu0 %v1536
        %1543 = vmatprep.subr.bf16.mxu0 0
        %1544 = vmatpush1.bf16.msra.mxu0 0
        %1545 = vmatprep.subr.bf16.mxu0 0
        %1546 = vmatpush1.bf16.msra.mxu0 0
        %1547 = vmatprep.subr.bf16.mxu0 0
        %1548 = vmatpush1.bf16.msra.mxu0 0
        %1549 = vmatprep.subr.bf16.mxu0 0
        %1550 = vmatpush1.bf16.msra.mxu0 0
        %1551 = vmatprep.subr.bf16.mxu0 0
        %1552 = vmatpush1.bf16.msra.mxu0 0
        %1553 = vmatprep.subr.bf16.mxu0 0
        %1554 = vmatpush1.bf16.msra.mxu0 0
        %1555 = vmatprep.subr.bf16.mxu0 0
        %1556 = vmatpush1.bf16.msra.mxu0 0
        %1557 = vmatprep.subr.bf16.mxu0 0
        %1558 = vmatpush1.bf16.msra.mxu0 0
        %1559 = vmatprep.subr.bf16.mxu0 0
        %1560 = vmatpush1.bf16.msra.mxu0 0
        %1561 = vmatprep.subr.bf16.mxu0 0
        %1562 = vmatpush1.bf16.msra.mxu0 0
        %1563 = vmatprep.subr.bf16.mxu0 0
        %1564 = vmatpush1.bf16.msra.mxu0 0
        %1565 = vmatprep.subr.bf16.mxu0 0
        %1566 = vmatpush1.bf16.msra.mxu0 0
        %1567 = vmatprep.subr.bf16.mxu0 0
        %1568 = vmatpush1.bf16.msra.mxu0 0
        %1569 = vmatprep.subr.bf16.mxu0 0
        %1570 = vmatpush1.bf16.msra.mxu0 0
        %1571 = vmatprep.subr.bf16.mxu0 0
        %1572 = vmatpush1.bf16.msra.mxu0 0
        %1573 = vmatprep.mubr.bf16.mxu0 0
        %1574 = vmatmul.mubr.bf16.gmra.mrb[0].mxu0 %v1539
        %v1575 = vpop.f32.mrb[0].mxu0
        %v1576 = vadd.f32 0.0, %v1575
        %v1577 = vpop.f32.mrb[0].mxu0
        %v1578 = vpop.f32.mrb[0].mxu0
        %v1579 = vadd.f32 0.0, %v1578
        %v1580 = vpop.f32.mrb[0].mxu0
        %1581 = vdwg.mxu0
        %v1582 = vpack.c.bf16 %v1579, %v1576
        %v1583 = vpack.c.bf16 %v1454, %v1453
        %v1585 = vsel %vm810, %v1582, 0
        %1587 = vmatprep.subr.bf16.mxu0 0
        %1588 = vmatpush1.bf16.msra.mxu0 %v1583
        %1589 = vmatprep.subr.bf16.mxu0 0
        %1590 = vmatpush1.bf16.msra.mxu0 0
        %1591 = vmatprep.subr.bf16.mxu0 0
        %1592 = vmatpush1.bf16.msra.mxu0 0
        %1593 = vmatprep.subr.bf16.mxu0 0
        %1594 = vmatpush1.bf16.msra.mxu0 0
        %1595 = vmatprep.subr.bf16.mxu0 0
        %1596 = vmatpush1.bf16.msra.mxu0 0
        %1597 = vmatprep.subr.bf16.mxu0 0
        %1598 = vmatpush1.bf16.msra.mxu0 0
        %1599 = vmatprep.subr.bf16.mxu0 0
        %1600 = vmatpush1.bf16.msra.mxu0 0
        %1601 = vmatprep.subr.bf16.mxu0 0
        %1602 = vmatpush1.bf16.msra.mxu0 0
        %1603 = vmatprep.subr.bf16.mxu0 0
        %1604 = vmatpush1.bf16.msra.mxu0 0
        %1605 = vmatprep.subr.bf16.mxu0 0
        %1606 = vmatpush1.bf16.msra.mxu0 0
        %1607 = vmatprep.subr.bf16.mxu0 0
        %1608 = vmatpush1.bf16.msra.mxu0 0
        %1609 = vmatprep.subr.bf16.mxu0 0
        %1610 = vmatpush1.bf16.msra.mxu0 0
        %1611 = vmatprep.subr.bf16.mxu0 0
        %1612 = vmatpush1.bf16.msra.mxu0 0
        %1613 = vmatprep.subr.bf16.mxu0 0
        %1614 = vmatpush1.bf16.msra.mxu0 0
        %1615 = vmatprep.subr.bf16.mxu0 0
        %1616 = vmatpush1.bf16.msra.mxu0 0
        %1617 = vmatprep.subr.bf16.mxu0 0
        %1618 = vmatpush1.bf16.msra.mxu0 0
        %1619 = vmatprep.mubr.bf16.mxu0 0
        %1620 = vmatmul.mubr.bf16.gmra.mrb[0].mxu0 %v1585
        %v1621 = vpop.f32.mrb[0].mxu0
        %v1622 = vadd.f32 0.0, %v1621
        %v1623 = vpop.f32.mrb[0].mxu0
        %v1624 = vpop.f32.mrb[0].mxu0
        %v1625 = vadd.f32 0.0, %v1624
        %v1626 = vpop.f32.mrb[0].mxu0
        %1627 = vdwg.mxu0
        %v1629 = vlaneseq
        %v1630 = vshrl.u32 %v1629, 7
        %v1631 = vsub.s32 0, %v1630
        %v1632 = vrot.slane %v1458, %v1631
        %v1634 = vadd.f32 %v1632, %v1622
        %v1635 = vadd.f32 %v1632, %v1625
        %1636 = vrot.lane.b32.xlu0 %v1459, 112
        %v1637 = vpop.permute.xlu0 %1636
        %1638 = vrot.lane.b32.xlu0 %v1459, 80
        %v1639 = vpop.permute.xlu0 %1638
        %v1641 = vsel %vm810, %v1637, 0
        %v1644 = vsel %vm810, %v1639, 0
        %1646 = vmatprep.subr.bf16.mxu0 0
        %1647 = vmatpush1.bf16.xpose.msra.mxu0 %v1644
        %1648 = vmatprep.subr.bf16.mxu0 0
        %1649 = vmatpush1.bf16.xpose.msra.mxu0 0
        %1650 = vmatprep.subr.bf16.mxu0 0
        %1651 = vmatpush1.bf16.xpose.msra.mxu0 0
        %1652 = vmatprep.subr.bf16.mxu0 0
        %1653 = vmatpush1.bf16.xpose.msra.mxu0 0
        %1654 = vmatprep.subr.bf16.mxu0 0
        %1655 = vmatpush1.bf16.xpose.msra.mxu0 0
        %1656 = vmatprep.subr.bf16.mxu0 0
        %1657 = vmatpush1.bf16.xpose.msra.mxu0 0
        %1658 = vmatprep.subr.bf16.mxu0 0
        %1659 = vmatpush1.bf16.xpose.msra.mxu0 0
        %1660 = vmatprep.subr.bf16.mxu0 0
        %1661 = vmatpush1.bf16.xpose.msra.mxu0 0
        %1662 = vmatprep.subr.bf16.mxu0 0
        %1663 = vmatpush1.bf16.xpose.msra.mxu0 0
        %1664 = vmatprep.subr.bf16.mxu0 0
        %1665 = vmatpush1.bf16.xpose.msra.mxu0 0
        %1666 = vmatprep.subr.bf16.mxu0 0
        %1667 = vmatpush1.bf16.xpose.msra.mxu0 0
        %1668 = vmatprep.subr.bf16.mxu0 0
        %1669 = vmatpush1.bf16.xpose.msra.mxu0 0
        %1670 = vmatprep.subr.bf16.mxu0 0
        %1671 = vmatpush1.bf16.xpose.msra.mxu0 0
        %1672 = vmatprep.subr.bf16.mxu0 0
        %1673 = vmatpush1.bf16.xpose.msra.mxu0 0
        %1674 = vmatprep.subr.bf16.mxu0 0
        %1675 = vmatpush1.bf16.xpose.msra.mxu0 0
        %1676 = vmatprep.subr.bf16.mxu0 0
        %1677 = vmatpush1.bf16.xpose.msra.mxu0 0
        %1678 = vmatprep.mubr.bf16.mxu0 0
        %1679 = vmatmul.mubr.bf16.gmra.mrb[0].mxu0 %v1641
        %v1680 = vpop.f32.mrb[0].mxu0
        %v1681 = vadd.f32 0.0, %v1680
        %v1682 = vpop.f32.mrb[0].mxu0
        %v1683 = vpop.f32.mrb[0].mxu0
        %v1684 = vadd.f32 0.0, %v1683
        %v1685 = vpop.f32.mrb[0].mxu0
        %1686 = vdwg.mxu0
        %v1687 = vmul.f32 %v1681, 0.25
        %v1688 = vmul.f32 %v1684, 0.25
        %v1689 = vsel %vm810, %v1687, -inf
        %1690 = vmax.xlane.f32.xlu0 %v1689
        %v1691 = vpop.xlane.xlu0 %1690
        %v1692 = vsel %vm810, %v1688, -inf
        %1693 = vmax.xlane.f32.xlu0 %v1692
        %v1694 = vpop.xlane.xlu0 %1693
        %v1695 = vsub.f32 %v1687, %v1691
        %v1696 = vsub.f32 %v1688, %v1694
        %v1697 = vmul.f32 %v1695, 1.442695
        %v1698 = vpow.pop %v1697
        %v1699 = vmul.f32 %v1696, 1.442695
        %v1700 = vpow.pop %v1699
        %v1701 = vsel %vm810, %v1698, 0.0
        %1702 = vadd.xlane.f32.xlu0 %v1701
        %v1703 = vpop.xlane.xlu0 %1702
        %v1704 = vsel %vm810, %v1700, 0.0
        %1705 = vadd.xlane.f32.xlu0 %v1704
        %v1706 = vpop.xlane.xlu0 %1705
        %v1707 = vrcp.pop %v1703
        %v1708 = vrcp.pop %v1706
        %v1709 = vmul.f32 %v1698, %v1707
        %v1710 = vmul.f32 %v1700, %v1708
        %v1711 = vpack.c.bf16 %v1710, %v1709
        %1712 = vrot.lane.b32.xlu0 %v1459, 48
        %v1713 = vpop.permute.xlu0 %1712
        %v1716 = vsel %vm810, %v1711, 0
        %1718 = vmatprep.subr.bf16.mxu0 0
        %1719 = vmatpush1.bf16.msra.mxu0 %v1713
        %1720 = vmatprep.subr.bf16.mxu0 0
        %1721 = vmatpush1.bf16.msra.mxu0 0
        %1722 = vmatprep.subr.bf16.mxu0 0
        %1723 = vmatpush1.bf16.msra.mxu0 0
        %1724 = vmatprep.subr.bf16.mxu0 0
        %1725 = vmatpush1.bf16.msra.mxu0 0
        %1726 = vmatprep.subr.bf16.mxu0 0
        %1727 = vmatpush1.bf16.msra.mxu0 0
        %1728 = vmatprep.subr.bf16.mxu0 0
        %1729 = vmatpush1.bf16.msra.mxu0 0
        %1730 = vmatprep.subr.bf16.mxu0 0
        %1731 = vmatpush1.bf16.msra.mxu0 0
        %1732 = vmatprep.subr.bf16.mxu0 0
        %1733 = vmatpush1.bf16.msra.mxu0 0
        %1734 = vmatprep.subr.bf16.mxu0 0
        %1735 = vmatpush1.bf16.msra.mxu0 0
        %1736 = vmatprep.subr.bf16.mxu0 0
        %1737 = vmatpush1.bf16.msra.mxu0 0
        %1738 = vmatprep.subr.bf16.mxu0 0
        %1739 = vmatpush1.bf16.msra.mxu0 0
        %1740 = vmatprep.subr.bf16.mxu0 0
        %1741 = vmatpush1.bf16.msra.mxu0 0
        %1742 = vmatprep.subr.bf16.mxu0 0
        %1743 = vmatpush1.bf16.msra.mxu0 0
        %1744 = vmatprep.subr.bf16.mxu0 0
        %1745 = vmatpush1.bf16.msra.mxu0 0
        %1746 = vmatprep.subr.bf16.mxu0 0
        %1747 = vmatpush1.bf16.msra.mxu0 0
        %1748 = vmatprep.subr.bf16.mxu0 0
        %1749 = vmatpush1.bf16.msra.mxu0 0
        %1750 = vmatprep.mubr.bf16.mxu0 0
        %1751 = vmatmul.mubr.bf16.gmra.mrb[0].mxu0 %v1716
        %v1752 = vpop.f32.mrb[0].mxu0
        %v1753 = vadd.f32 0.0, %v1752
        %v1754 = vpop.f32.mrb[0].mxu0
        %v1755 = vpop.f32.mrb[0].mxu0
        %v1756 = vadd.f32 0.0, %v1755
        %v1757 = vpop.f32.mrb[0].mxu0
        %1758 = vdwg.mxu0
        %v1759 = vpack.c.bf16 %v1756, %v1753
        %v1760 = vpack.c.bf16 %v1456, %v1455
        %v1762 = vsel %vm810, %v1759, 0
        %1764 = vmatprep.subr.bf16.mxu0 0
        %1765 = vmatpush1.bf16.msra.mxu0 %v1760
        %1766 = vmatprep.subr.bf16.mxu0 0
        %1767 = vmatpush1.bf16.msra.mxu0 0
        %1768 = vmatprep.subr.bf16.mxu0 0
        %1769 = vmatpush1.bf16.msra.mxu0 0
        %1770 = vmatprep.subr.bf16.mxu0 0
        %1771 = vmatpush1.bf16.msra.mxu0 0
        %1772 = vmatprep.subr.bf16.mxu0 0
        %1773 = vmatpush1.bf16.msra.mxu0 0
        %1774 = vmatprep.subr.bf16.mxu0 0
        %1775 = vmatpush1.bf16.msra.mxu0 0
        %1776 = vmatprep.subr.bf16.mxu0 0
        %1777 = vmatpush1.bf16.msra.mxu0 0
        %1778 = vmatprep.subr.bf16.mxu0 0
        %1779 = vmatpush1.bf16.msra.mxu0 0
        %1780 = vmatprep.subr.bf16.mxu0 0
        %1781 = vmatpush1.bf16.msra.mxu0 0
        %1782 = vmatprep.subr.bf16.mxu0 0
        %1783 = vmatpush1.bf16.msra.mxu0 0
        %1784 = vmatprep.subr.bf16.mxu0 0
        %1785 = vmatpush1.bf16.msra.mxu0 0
        %1786 = vmatprep.subr.bf16.mxu0 0
        %1787 = vmatpush1.bf16.msra.mxu0 0
        %1788 = vmatprep.subr.bf16.mxu0 0
        %1789 = vmatpush1.bf16.msra.mxu0 0
        %1790 = vmatprep.subr.bf16.mxu0 0
        %1791 = vmatpush1.bf16.msra.mxu0 0
        %1792 = vmatprep.subr.bf16.mxu0 0
        %1793 = vmatpush1.bf16.msra.mxu0 0
        %1794 = vmatprep.subr.bf16.mxu0 0
        %1795 = vmatpush1.bf16.msra.mxu0 0
        %1796 = vmatprep.mubr.bf16.mxu0 0
        %1797 = vmatmul.mubr.bf16.gmra.mrb[0].mxu0 %v1762
        %v1798 = vpop.f32.mrb[0].mxu0
        %v1799 = vadd.f32 0.0, %v1798
        %v1800 = vpop.f32.mrb[0].mxu0
        %v1801 = vpop.f32.mrb[0].mxu0
        %v1802 = vadd.f32 0.0, %v1801
        %v1803 = vpop.f32.mrb[0].mxu0
        %1804 = vdwg.mxu0
        %v1805 = vadd.f32 %v1634, %v1799
        %v1806 = vadd.f32 %v1635, %v1802
        %v1807 = vadd.f32 %v1344, %v1805
        %v1808 = vadd.f32 %v1345, %v1806
        %s1809 = scalar_lea.vmem %s10, 1
        %v1810 = vld [vmem:[%s1809] sm:$0x1]
        %s1811 = scalar_lea.vmem %s11, 1
        %v1812 = vld [vmem:[%s1811] sm:$0x1]
        %v1813 = vsel %vm699, %v1807, 0.0
        %1814 = vadd.xlane.f32.xlu0 %v1813
        %v1815 = vpop.xlane.xlu0 %1814
        %v1816 = vsel %vm699, %v1808, 0.0
        %1817 = vadd.xlane.f32.xlu0 %v1816
        %v1818 = vpop.xlane.xlu0 %1817
        %v1819 = vmul.f32 %v1815, %v706
        %v1820 = vmul.f32 %v1818, %v706
        %v1821 = vsub.f32 %v1807, %v1819
        %v1822 = vsub.f32 %v1808, %v1820
        %v1823 = vmul.f32 %v1821, %v1821
        %v1824 = vmul.f32 %v1822, %v1822
        %v1825 = vsel %vm699, %v1823, 0.0
        %1826 = vadd.xlane.f32.xlu0 %v1825
        %v1827 = vpop.xlane.xlu0 %1826
        %v1828 = vsel %vm699, %v1824, 0.0
        %1829 = vadd.xlane.f32.xlu0 %v1828
        %v1830 = vpop.xlane.xlu0 %1829
        %v1831 = vmul.f32 %v1827, %v706
        %v1832 = vmul.f32 %v1830, %v706
        %v1833 = vadd.f32 %v1831, 1e-06
        %v1834 = vadd.f32 %v1832, 1e-06
        %v1835 = vrsqrt.pop %v1833
        %v1836 = vrsqrt.pop %v1834
        %v1837 = vmul.f32 %v1821, %v1835
        %v1838 = vmul.f32 %v1822, %v1836
        %v1840 = vlaneseq
        %v1841 = vshrl.u32 %v1840, 7
        %v1842 = vsub.s32 0, %v1841
        %v1843 = vrot.slane %v1810, %v1842
        %v1845 = vmul.f32 %v1837, %v1843
        %v1846 = vmul.f32 %v1838, %v1843
        %v1848 = vlaneseq
        %v1849 = vshrl.u32 %v1848, 7
        %v1850 = vsub.s32 0, %v1849
        %v1851 = vrot.slane %v1812, %v1850
        %v1853 = vadd.f32 %v1845, %v1851
        %v1854 = vadd.f32 %v1846, %v1851
        %s1855 = scalar_lea.vmem %s12, 32
        %v1856 = vld [vmem:[%s1855] sm:$0xff]
        %v1857 = vld [vmem:[%s1855 + $0x8] sm:$0xff]
        %v1858 = vld [vmem:[%s1855 + $0x10] sm:$0xff]
        %v1859 = vld [vmem:[%s1855 + $0x18] sm:$0xff]
        %v1860 = vpack.c.bf16 %v1854, %v1853
        %v1861 = vpack.c.bf16 %v1857, %v1856
        %v1862 = vpack.c.bf16 %v1859, %v1858
        %s1863 = scalar_lea.vmem %s13, 1
        %v1864 = vld [vmem:[%s1863] sm:$0x1]
        %v1866 = vlaneseq
        %v1867 = vshrl.u32 %v1866, 7
        %v1868 = vsub.s32 0, %v1867
        %v1869 = vrot.slane %v1864, %v1868
        %v1872 = vsel %vm699, %v1860, 0
        %1874 = vmatprep.subr.bf16.mxu0 0
        %1875 = vmatpush1.bf16.msra.mxu0 %v1861
        %1876 = vmatprep.subr.bf16.mxu0 0
        %1877 = vmatpush1.bf16.msra.mxu0 %v1862
        %1878 = vmatprep.subr.bf16.mxu0 0
        %1879 = vmatpush1.bf16.msra.mxu0 0
        %1880 = vmatprep.subr.bf16.mxu0 0
        %1881 = vmatpush1.bf16.msra.mxu0 0
        %1882 = vmatprep.subr.bf16.mxu0 0
        %1883 = vmatpush1.bf16.msra.mxu0 0
        %1884 = vmatprep.subr.bf16.mxu0 0
        %1885 = vmatpush1.bf16.msra.mxu0 0
        %1886 = vmatprep.subr.bf16.mxu0 0
        %1887 = vmatpush1.bf16.msra.mxu0 0
        %1888 = vmatprep.subr.bf16.mxu0 0
        %1889 = vmatpush1.bf16.msra.mxu0 0
        %1890 = vmatprep.subr.bf16.mxu0 0
        %1891 = vmatpush1.bf16.msra.mxu0 0
        %1892 = vmatprep.subr.bf16.mxu0 0
        %1893 = vmatpush1.bf16.msra.mxu0 0
        %1894 = vmatprep.subr.bf16.mxu0 0
        %1895 = vmatpush1.bf16.msra.mxu0 0
        %1896 = vmatprep.subr.bf16.mxu0 0
        %1897 = vmatpush1.bf16.msra.mxu0 0
        %1898 = vmatprep.subr.bf16.mxu0 0
        %1899 = vmatpush1.bf16.msra.mxu0 0
        %1900 = vmatprep.subr.bf16.mxu0 0
        %1901 = vmatpush1.bf16.msra.mxu0 0
        %1902 = vmatprep.subr.bf16.mxu0 0
        %1903 = vmatpush1.bf16.msra.mxu0 0
        %1904 = vmatprep.subr.bf16.mxu0 0
        %1905 = vmatpush1.bf16.msra.mxu0 0
        %1906 = vmatprep.mubr.bf16.mxu0 0
        %1907 = vmatmul.mubr.bf16.gmra.mrb[0].mxu0 %v1872
        %v1908 = vpop.f32.mrb[0].mxu0
        %v1909 = vadd.f32 %v1869, %v1908
        %v1910 = vpop.f32.mrb[0].mxu0
        %v1911 = vpop.f32.mrb[0].mxu0
        %v1912 = vadd.f32 %v1869, %v1911
        %v1913 = vpop.f32.mrb[0].mxu0
        %1914 = vdwg.mxu0
        %v1915 = vmul.f32 %v1909, %v1909
        %v1916 = vmul.f32 %v1912, %v1912
        %v1917 = vmul.f32 %v1909, %v1915
        %v1918 = vmul.f32 %v1912, %v1916
        %v1919 = vmul.f32 %v1917, 0.044715
        %v1920 = vmul.f32 %v1918, 0.044715
        %v1921 = vadd.f32 %v1909, %v1919
        %v1922 = vadd.f32 %v1912, %v1920
        %v1923 = vmul.f32 %v1921, 0.7978846
        %v1924 = vmul.f32 %v1922, 0.7978846
        %v1925 = vtanh.pop %v1923
        %v1926 = vtanh.pop %v1924
        %v1927 = vadd.f32 %v1925, 1.0
        %v1928 = vadd.f32 %v1926, 1.0
        %v1929 = vmul.f32 %v1927, 0.5
        %v1930 = vmul.f32 %v1928, 0.5
        %v1931 = vmul.f32 %v1909, %v1929
        %v1932 = vmul.f32 %v1912, %v1930
        %s1933 = scalar_lea.vmem %s14, 64
        %v1934 = vld [vmem:[%s1933] sm:$0xff]
        %v1935 = vld [vmem:[%s1933 + $0x8] sm:$0xff]
        %v1936 = vld [vmem:[%s1933 + $0x10] sm:$0xff]
        %v1937 = vld [vmem:[%s1933 + $0x18] sm:$0xff]
        %v1938 = vld [vmem:[%s1933 + $0x20] sm:$0xff]
        %v1939 = vld [vmem:[%s1933 + $0x28] sm:$0xff]
        %v1940 = vld [vmem:[%s1933 + $0x30] sm:$0xff]
        %v1941 = vld [vmem:[%s1933 + $0x38] sm:$0xff]
        %v1942 = vpack.c.bf16 %v1932, %v1931
        %v1943 = vpack.c.bf16 %v1935, %v1934
        %v1944 = vpack.c.bf16 %v1937, %v1936
        %v1945 = vpack.c.bf16 %v1939, %v1938
        %v1946 = vpack.c.bf16 %v1941, %v1940
        %v1948 = vsel %vm1290, %v1942, 0
        %1950 = vmatprep.subr.bf16.mxu0 0
        %1951 = vmatpush1.bf16.msra.mxu0 %v1943
        %1952 = vmatprep.subr.bf16.mxu0 0
        %1953 = vmatpush1.bf16.msra.mxu0 %v1944
        %1954 = vmatprep.subr.bf16.mxu0 0
        %1955 = vmatpush1.bf16.msra.mxu0 %v1945
        %1956 = vmatprep.subr.bf16.mxu0 0
        %1957 = vmatpush1.bf16.msra.mxu0 %v1946
        %1958 = vmatprep.subr.bf16.mxu0 0
        %1959 = vmatpush1.bf16.msra.mxu0 0
        %1960 = vmatprep.subr.bf16.mxu0 0
        %1961 = vmatpush1.bf16.msra.mxu0 0
        %1962 = vmatprep.subr.bf16.mxu0 0
        %1963 = vmatpush1.bf16.msra.mxu0 0
        %1964 = vmatprep.subr.bf16.mxu0 0
        %1965 = vmatpush1.bf16.msra.mxu0 0
        %1966 = vmatprep.subr.bf16.mxu0 0
        %1967 = vmatpush1.bf16.msra.mxu0 0
        %1968 = vmatprep.subr.bf16.mxu0 0
        %1969 = vmatpush1.bf16.msra.mxu0 0
        %1970 = vmatprep.subr.bf16.mxu0 0
        %1971 = vmatpush1.bf16.msra.mxu0 0
        %1972 = vmatprep.subr.bf16.mxu0 0
        %1973 = vmatpush1.bf16.msra.mxu0 0
        %1974 = vmatprep.subr.bf16.mxu0 0
        %1975 = vmatpush1.bf16.msra.mxu0 0
        %1976 = vmatprep.subr.bf16.mxu0 0
        %1977 = vmatpush1.bf16.msra.mxu0 0
        %1978 = vmatprep.subr.bf16.mxu0 0
        %1979 = vmatpush1.bf16.msra.mxu0 0
        %1980 = vmatprep.subr.bf16.mxu0 0
        %1981 = vmatpush1.bf16.msra.mxu0 0
        %1982 = vmatprep.mubr.bf16.mxu0 0
        %1983 = vmatmul.mubr.bf16.gmra.mrb[0].mxu0 %v1948
        %v1984 = vpop.f32.mrb[0].mxu0
        %v1985 = vadd.f32 0.0, %v1984
        %v1986 = vpop.f32.mrb[0].mxu0
        %v1987 = vpop.f32.mrb[0].mxu0
        %v1988 = vadd.f32 0.0, %v1987
        %v1989 = vpop.f32.mrb[0].mxu0
        %1990 = vdwg.mxu0
        %v1991 = vadd.f32 %v1807, %v1985
        %v1992 = vadd.f32 %v1808, %v1988
        %s1993 = scalar_lea.vmem %s15, 1
        %v1994 = vld [vmem:[%s1993] sm:$0x1]
        %v1996 = vlaneseq
        %v1997 = vshrl.u32 %v1996, 7
        %v1998 = vsub.s32 0, %v1997
        %v1999 = vrot.slane %v1994, %v1998
        %v2001 = vadd.f32 %v1991, %v1999
        %v2002 = vadd.f32 %v1992, %v1999
        %v2003 = vld [vmem:[%s16] sm:$0x1]
        %v2004 = vld [vmem:[%s17] sm:$0x1]
        %v2005 = vsel %vm699, %v2001, 0.0
        %2006 = vadd.xlane.f32.xlu0 %v2005
        %v2007 = vpop.xlane.xlu0 %2006
        %v2008 = vsel %vm699, %v2002, 0.0
        %2009 = vadd.xlane.f32.xlu0 %v2008
        %v2010 = vpop.xlane.xlu0 %2009
        %v2011 = vmul.f32 %v2007, %v706
        %v2012 = vmul.f32 %v2010, %v706
        %v2013 = vsub.f32 %v2001, %v2011
        %v2014 = vsub.f32 %v2002, %v2012
        %v2015 = vmul.f32 %v2013, %v2013
        %v2016 = vmul.f32 %v2014, %v2014
        %v2017 = vsel %vm699, %v2015, 0.0
        %2018 = vadd.xlane.f32.xlu0 %v2017
        %v2019 = vpop.xlane.xlu0 %2018
        %v2020 = vsel %vm699, %v2016, 0.0
        %2021 = vadd.xlane.f32.xlu0 %v2020
        %v2022 = vpop.xlane.xlu0 %2021
        %v2023 = vmul.f32 %v2019, %v706
        %v2024 = vmul.f32 %v2022, %v706
        %v2025 = vadd.f32 %v2023, 1e-06
        %v2026 = vadd.f32 %v2024, 1e-06
        %v2027 = vrsqrt.pop %v2025
        %v2028 = vrsqrt.pop %v2026
        %v2029 = vmul.f32 %v2013, %v2027
        %v2030 = vmul.f32 %v2014, %v2028
        %v2032 = vlaneseq
        %v2033 = vshrl.u32 %v2032, 7
        %v2034 = vsub.s32 0, %v2033
        %v2035 = vrot.slane %v2003, %v2034
        %v2037 = vmul.f32 %v2029, %v2035
        %v2038 = vmul.f32 %v2030, %v2035
        %v2040 = vlaneseq
        %v2041 = vshrl.u32 %v2040, 7
        %v2042 = vsub.s32 0, %v2041
        %v2043 = vrot.slane %v2004, %v2042
        %v2045 = vadd.f32 %v2037, %v2043
        %v2046 = vadd.f32 %v2038, %v2043
        %v2047 = vld [vmem:[%s18] sm:$0xff]
        %v2048 = vld [vmem:[%s18 + $0x8] sm:$0xff]
        %v2049 = vld [vmem:[%s18 + $0x10] sm:$0xff]
        %v2050 = vld [vmem:[%s18 + $0x18] sm:$0xff]
        %v2051 = vpack.c.bf16 %v2046, %v2045
        %v2052 = vpack.c.bf16 %v2048, %v2047
        %v2053 = vpack.c.bf16 %v2050, %v2049
        %v2054 = vld [vmem:[%s19] sm:$0x1]
        %v2056 = vlaneseq
        %v2057 = vshrl.u32 %v2056, 7
        %v2058 = vsub.s32 0, %v2057
        %v2059 = vrot.slane %v2054, %v2058
        %v2062 = vsel %vm699, %v2051, 0
        %2064 = vmatprep.subr.bf16.mxu0 0
        %2065 = vmatpush1.bf16.msra.mxu0 %v2052
        %2066 = vmatprep.subr.bf16.mxu0 0
        %2067 = vmatpush1.bf16.msra.mxu0 %v2053
        %2068 = vmatprep.subr.bf16.mxu0 0
        %2069 = vmatpush1.bf16.msra.mxu0 0
        %2070 = vmatprep.subr.bf16.mxu0 0
        %2071 = vmatpush1.bf16.msra.mxu0 0
        %2072 = vmatprep.subr.bf16.mxu0 0
        %2073 = vmatpush1.bf16.msra.mxu0 0
        %2074 = vmatprep.subr.bf16.mxu0 0
        %2075 = vmatpush1.bf16.msra.mxu0 0
        %2076 = vmatprep.subr.bf16.mxu0 0
        %2077 = vmatpush1.bf16.msra.mxu0 0
        %2078 = vmatprep.subr.bf16.mxu0 0
        %2079 = vmatpush1.bf16.msra.mxu0 0
        %2080 = vmatprep.subr.bf16.mxu0 0
        %2081 = vmatpush1.bf16.msra.mxu0 0
        %2082 = vmatprep.subr.bf16.mxu0 0
        %2083 = vmatpush1.bf16.msra.mxu0 0
        %2084 = vmatprep.subr.bf16.mxu0 0
        %2085 = vmatpush1.bf16.msra.mxu0 0
        %2086 = vmatprep.subr.bf16.mxu0 0
        %2087 = vmatpush1.bf16.msra.mxu0 0
        %2088 = vmatprep.subr.bf16.mxu0 0
        %2089 = vmatpush1.bf16.msra.mxu0 0
        %2090 = vmatprep.subr.bf16.mxu0 0
        %2091 = vmatpush1.bf16.msra.mxu0 0
        %2092 = vmatprep.subr.bf16.mxu0 0
        %2093 = vmatpush1.bf16.msra.mxu0 0
        %2094 = vmatprep.subr.bf16.mxu0 0
        %2095 = vmatpush1.bf16.msra.mxu0 0
        %2096 = vmatprep.mubr.bf16.mxu0 0
        %2097 = vmatmul.mubr.bf16.gmra.mrb[0].mxu0 %v2062
        %v2098 = vpop.f32.mrb[0].mxu0
        %v2099 = vadd.f32 %v2059, %v2098
        %v2100 = vpop.f32.mrb[0].mxu0
        %v2101 = vpop.f32.mrb[0].mxu0
        %v2102 = vadd.f32 %v2059, %v2101
        %v2103 = vpop.f32.mrb[0].mxu0
        %2104 = vdwg.mxu0
        %2105 = vst.msk [vmem:[%s622] sm:$0xff] %vm699, %v2099
        %2106 = vst.msk [vmem:[%s622 + $0x8] sm:$0xff] %vm699, %v2102
        %s2107 = sand.u32 %s467, 1
        %s2108 = scalar_lea.sflag [#allocation3], %s2107
        %s2109 = sand.u32 %s467, 1
        %s2110 = smul.addr %s2109, 16
        %s2111 = scalar_lea.vmem [#allocation2], %s2110
        // Predicated region
        $region101: #{vit_engine_forward.1} parent=99 // pred_check
          %p2112 = pneg %p477
        $region102: #{vit_engine_forward.1} parent=99 // pred_check_branch
          %2114 = sbr.rel (%p2112) target = $region104
        $region103: #{vit_engine_forward.1} parent=99 // pred_region
          %s2116 = ssub.s32 256, 256
          %2117 = vsyncadd %s2108, %s2116
          %s2118 = smul.addr %s34, 2
          %s2119 = smul.addr %s2118, 128
          %s2120 = scalar_lea.hbm %s20, %s2119
          %s2121 = sshll.u32 %s2111, 4
          %s2122 = int_to_ptr.vmem [resolvable:$true] %s2121
          %2127 = dma.vmem_to_hbm [thread:$0]  %s2122, 256, %s2120, %s2108, 128, 128, 8
        $region104: #{vit_engine_forward.1} parent=99 // pred_fallthru
          _
      $region100: #{vit_engine_forward.1} parent=5 // pred_fallthru
        _
      %p2128 = scmp.le.s32.totalorder 2, %s29
      // Predicated region
      $region105: #{vit_engine_forward.1} parent=5 // pred_check
        %p2129 = pneg %p2128
      $region106: #{vit_engine_forward.1} parent=5 // pred_check_branch
        %2131 = sbr.rel (%p2129) target = $region108
      $region107: #{vit_engine_forward.1} parent=5 // pred_region
        %s2132 = ssub.s32 %s29, 2
        // Predicated region
        $region109: #{vit_engine_forward.1} parent=107 // pred_check
          %p2133 = pneg %p483
        $region110: #{vit_engine_forward.1} parent=107 // pred_check_branch
          %2135 = sbr.rel (%p2133) target = $region112
        $region111: #{vit_engine_forward.1} parent=107 // pred_region
          %s2136 = sand.u32 %s468, 1
          %s2137 = scalar_lea.sflag [#allocation3], %s2136
          %s2138 = sand.u32 %s468, 1
          %s2139 = smul.addr %s2138, 16
          %s2140 = scalar_lea.vmem [#allocation2], %s2139
          %2141 = dma.done %s2137, 256
        $region112: #{vit_engine_forward.1} parent=107 // pred_fallthru
          _
      $region108: #{vit_engine_forward.1} parent=5 // pred_fallthru
        _
    $region6: #{vit_engine_forward.1} parent=1 // loop_footer
      %s33 = sadd.s32 1, %s29
    $region7: #{vit_engine_forward.1} parent=1 // loop_footer_branch
      %28 = sbr.rel target = $region3
    $region8: #{vit_engine_forward.1} parent=1 // loop_exit
      _
    %2142 = vsyncpa [#allocation3], 1
    %s2143 = scalar_lea.sflag [#allocation3], 1
    %2144 = vsyncpa %s2143, 1

</llo_original>
